<compile_context>
chip_gen: v7x
topology: tpu7x:2x2x1
jax: 0.10.0
libtpu: 0.0.40
codegen_flags: <defaults>
</compile_context>

<pallas_src>
import functools

import jax
import jax.numpy as jnp
from jax.experimental import pallas as pl
from jax.experimental.pallas import tpu as pltpu


def make_rnn_kernel(layer_dim: int, seq_len: int, batch_pad: int,
                    hidden_dim: int, mxu_dtype):
    """Fused RNN -> FC -> sigmoid kernel for fixed (layers, T, Bp, H)."""

    L, T, Bp, H, dt = layer_dim, seq_len, batch_pad, hidden_dim, mxu_dtype

    def kernel(x_ref, wih0_ref, wsq_ref, b_ref, fc_ref, out_ref):
        # ---- hoisted loads: each ref is read exactly once ------------------
        x_flat = x_ref[...].astype(dt)            # (T*Bp, D), time-major
        w_ih0 = wih0_ref[...]                     # (D, H)   mxu dtype
        w_hh0 = wsq_ref[0]                        # (H, H)   mxu dtype
        b0 = b_ref[0]                             # (1, H)   f32

        # one-shot layer-0 input projection for all timesteps (+ bias)
        xw0 = jnp.dot(x_flat, w_ih0,
                      preferred_element_type=jnp.float32) + b0   # (T*Bp, H)

        deep = []
        for l in range(1, L):
            w_ih_l = wsq_ref[2 * l - 1]                          # (H, H)
            w_hh_l = wsq_ref[2 * l]                              # (H, H)
            b_b = jnp.broadcast_to(b_ref[l], (Bp, H))            # hoisted bcast
            deep.append((w_ih_l, w_hh_l, b_b))

        fcp = fc_ref[...]                         # (H+8, 128)  mxu dtype
        fc_w = fcp[:H]                            # (H, 128)
        fc_b = fcp[H:H + 1].astype(jnp.float32)   # (1, 128)

        # ---- t = 0: h0 == 0, so every h @ W_hh term vanishes ---------------
        hs = [None] * L
        hs[0] = jnp.maximum(xw0[0:Bp], 0.0).astype(dt)
        inp = hs[0]
        for l in range(1, L):
            w_ih_l, _, b_b = deep[l - 1]
            pre = jnp.dot(inp, w_ih_l, preferred_element_type=jnp.float32) + b_b
            hs[l] = jnp.maximum(pre, 0.0).astype(dt)
            inp = hs[l]

        # ---- t >= 1: full recurrence (statically unrolled; T*L is small) ---
        for t in range(1, T):
            pre0 = xw0[t * Bp:(t + 1) * Bp] + jnp.dot(
                hs[0], w_hh0, preferred_element_type=jnp.float32)
            hs[0] = jnp.maximum(pre0, 0.0).astype(dt)   # nonlinearity='relu'
            inp = hs[0]
            for l in range(1, L):
                w_ih_l, w_hh_l, b_b = deep[l - 1]
                pre = (jnp.dot(inp, w_ih_l, preferred_element_type=jnp.float32)
                       + jnp.dot(hs[l], w_hh_l, preferred_element_type=jnp.float32)
                       + b_b)
                hs[l] = jnp.maximum(pre, 0.0).astype(dt)
                inp = hs[l]

        # ---- out = sigmoid(fc(h_last[-1])), lane-dense (Bp, 128) tile ------
        logits = jnp.dot(hs[L - 1], fc_w,
                         preferred_element_type=jnp.float32) + fc_b
        out_ref[...] = jax.nn.sigmoid(logits)

    return kernel


def init_params(key, input_dim, hidden_dim, layer_dim, output_dim):
    """Deterministic synthetic init mirroring PyTorch uniform(-1/sqrt(H), 1/sqrt(H)).

    Weights stored pre-transposed to (in_features, out_features)."""
    params = []
    stdv = 1.0 / jnp.sqrt(jnp.float32(hidden_dim))
    for l in range(layer_dim):
        in_dim = input_dim if l == 0 else hidden_dim
        key, k1, k2, k3, k4 = jax.random.split(key, 5)
        w_ih = jax.random.uniform(k1, (in_dim, hidden_dim), jnp.float32, -stdv, stdv)
        w_hh = jax.random.uniform(k2, (hidden_dim, hidden_dim), jnp.float32, -stdv, stdv)
        b_ih = jax.random.uniform(k3, (1, hidden_dim), jnp.float32, -stdv, stdv)
        b_hh = jax.random.uniform(k4, (1, hidden_dim), jnp.float32, -stdv, stdv)
        params += [w_ih, w_hh, b_ih, b_hh]
    key, k5, k6 = jax.random.split(key, 3)
    fc_w = jax.random.uniform(k5, (hidden_dim, output_dim), jnp.float32, -stdv, stdv)
    fc_b = jax.random.uniform(k6, (1, output_dim), jnp.float32, -stdv, stdv)
    params += [fc_w, fc_b]
    return params


def prepare_params(params, layer_dim, output_dim, mxu_dtype=jnp.float32):
    """One-time, x-independent parameter packing (run once, outside the hot path).

    Returns (w_ih0, w_sq, b_all, fc_pack):
      w_ih0  : (D_in, H)      mxu dtype
      w_sq   : (2L-1, H, H)   mxu dtype; [W_hh(l0), W_ih(l1), W_hh(l1), ...]
      b_all  : (L, 1, H)      f32; pre-summed b_ih + b_hh per layer
      fc_pack: (H+8, 128)     mxu dtype; rows 0..H-1 = fc weight (zero-padded
                              to 128 output lanes), row H = fc bias, rest 0.
    """
    H = params[1].shape[0]
    OP = 128
    w_ih0 = params[0].astype(mxu_dtype)
    sq = [params[1]]                               # W_hh layer 0
    biases = [params[2] + params[3]]               # (1, H)
    for l in range(1, layer_dim):
        w_ih, w_hh, b_ih, b_hh = params[4 * l: 4 * l + 4]
        sq += [w_ih, w_hh]
        biases += [b_ih + b_hh]
    w_sq = jnp.stack(sq, axis=0).astype(mxu_dtype)             # (2L-1, H, H)
    b_all = jnp.stack(biases, axis=0)                          # (L, 1, H) f32
    fc_w, fc_b = params[-2], params[-1]
    fc_pack = jnp.zeros((H + 8, OP), jnp.float32)
    fc_pack = fc_pack.at[:H, :output_dim].set(fc_w)
    fc_pack = fc_pack.at[H, :output_dim].set(fc_b[0])
    return (w_ih0, w_sq, b_all, fc_pack.astype(mxu_dtype))


@functools.partial(jax.jit, static_argnames=("output_dim",))
def rnn_model_forward(x, prepared, *, output_dim):
    w_ih0, w_sq, b_all, fc_pack = prepared
    B, T, D = x.shape
    H = w_sq.shape[-1]
    L = b_all.shape[0]
    Bp = ((B + 7) // 8) * 8                        # sublane-aligned batch
    OP = fc_pack.shape[-1]                         # 128 (lane-dense output)
    dt = w_ih0.dtype                               # MXU operand dtype

    # Single fused pad + transpose + reshape of x -> time-major (T*Bp, D) so
    # per-step input slabs in the kernel are aligned 8-row slices.
    x_flat = jnp.pad(x, ((0, Bp - B), (0, 0), (0, 0))
                     ).transpose(1, 0, 2).reshape(T * Bp, D)

    kernel = make_rnn_kernel(L, T, Bp, H, dt)
    # Everything is tiny and fits VMEM: single invocation, no grid.
    out_pad = pl.pallas_call(
        kernel,
        out_shape=jax.ShapeDtypeStruct((Bp, OP), jnp.float32),
        in_specs=[pl.BlockSpec(memory_space=pltpu.MemorySpace.VMEM)] * 5,
        out_specs=pl.BlockSpec(memory_space=pltpu.MemorySpace.VMEM),
    )(x_flat, w_ih0, w_sq, b_all, fc_pack)
    return out_pad[:B, :output_dim]


def rnn_model_reference(x, params, layer_dim):
    """Pure-JAX f32 reference of the same forward pass (correctness check)."""
    B, T, _ = x.shape
    H = params[1].shape[0]
    hs = [jnp.zeros((B, H), jnp.float32) for _ in range(layer_dim)]
    for t in range(T):
        inp = x[:, t, :]
        for l in range(layer_dim):
            w_ih, w_hh, b_ih, b_hh = params[4 * l: 4 * l + 4]
            hs[l] = jax.nn.relu(inp @ w_ih + hs[l] @ w_hh + b_ih + b_hh)
            inp = hs[l]
    fc_w, fc_b = params[-2], params[-1]
    return jax.nn.sigmoid(hs[-1] @ fc_w + fc_b)


if __name__ == "__main__":
    # Small, deterministic configuration.
    B, T = 2, 8
    input_dim, hidden_dim, layer_dim, output_dim = 16, 32, 2, 4

    key = jax.random.PRNGKey(0)
    key, kx = jax.random.split(key)
    x = jax.random.normal(kx, (B, T, input_dim), jnp.float32)

    params = init_params(key, input_dim, hidden_dim, layer_dim, output_dim)
    ref = rnn_model_reference(x, params, layer_dim)

    # f32 path (default; matches PyTorch numerics, recommended on v5e).
    prepared_f32 = prepare_params(params, layer_dim, output_dim, jnp.float32)
    out = rnn_model_forward(x, prepared_f32, output_dim=output_dim)
    out = jax.block_until_ready(out)
    assert out.shape == (B, output_dim)
    assert jnp.allclose(out, ref, atol=1e-4, rtol=1e-4), "f32 mismatch vs reference"

    # bf16 MXU-operand path (recommended on v6e/v7x); f32 accumulation, so the
    # sigmoid outputs stay within a loose tolerance of the f32 reference.
    prepared_bf16 = prepare_params(params, layer_dim, output_dim, jnp.bfloat16)
    out_bf16 = rnn_model_forward(x, prepared_bf16, output_dim=output_dim)
    out_bf16 = jax.block_until_ready(out_bf16)
    assert out_bf16.shape == (B, output_dim)
    assert jnp.allclose(out_bf16, ref, atol=5e-2), "bf16 mismatch vs reference"

    print("KERNEL_OK")
</pallas_src>

<mosaic_0001>
module attributes {stable_mosaic.version = 11 : i64} {
  func.func @kernel(%arg0: memref<64x16xf32, #tpu.memory_space<vmem>>, %arg1: memref<16x32xf32, #tpu.memory_space<vmem>>, %arg2: memref<3x32x32xf32, #tpu.memory_space<vmem>>, %arg3: memref<2x1x32xf32, #tpu.memory_space<vmem>>, %arg4: memref<40x128xf32, #tpu.memory_space<vmem>>, %arg5: memref<8x128xf32, #tpu.memory_space<vmem>>) attributes {dimension_semantics = [], scalar_prefetch = 0 : i64, scratch_operands = 0 : i64, tpu.core_type = #tpu.core_type<tc>} {
    %c0 = arith.constant 0 : index
    %c0_0 = arith.constant 0 : index
    %0 = vector.load %arg0[%c0, %c0_0] : memref<64x16xf32, #tpu.memory_space<vmem>>, vector<64x16xf32>
    %c0_1 = arith.constant 0 : index
    %c0_2 = arith.constant 0 : index
    %1 = vector.load %arg1[%c0_1, %c0_2] : memref<16x32xf32, #tpu.memory_space<vmem>>, vector<16x32xf32>
    %c0_3 = arith.constant 0 : index
    %c0_4 = arith.constant 0 : index
    %c0_5 = arith.constant 0 : index
    %2 = vector.load %arg2[%c0_3, %c0_4, %c0_5] : memref<3x32x32xf32, #tpu.memory_space<vmem>>, vector<1x32x32xf32>
    %3 = vector.shape_cast %2 : vector<1x32x32xf32> to vector<32x32xf32>
    %c0_6 = arith.constant 0 : index
    %c0_7 = arith.constant 0 : index
    %c0_8 = arith.constant 0 : index
    %4 = vector.load %arg3[%c0_6, %c0_7, %c0_8] : memref<2x1x32xf32, #tpu.memory_space<vmem>>, vector<1x1x32xf32>
    %5 = vector.shape_cast %4 : vector<1x1x32xf32> to vector<1x32xf32>
    %cst = arith.constant dense<0.000000e+00> : vector<64x32xf32>
    %6 = tpu.matmul %0, %1, %cst {dimension_numbers = #tpu.dot_dimension_numbers<[1], [0], [0], [1], [0, 0, 1, 1], [], []>} : vector<64x16xf32>, vector<16x32xf32>, vector<64x32xf32> -> vector<64x32xf32>
    %7 = vector.broadcast %5 : vector<1x32xf32> to vector<64x32xf32>
    %8 = arith.addf %6, %7 : vector<64x32xf32>
    %c1 = arith.constant 1 : index
    %c0_9 = arith.constant 0 : index
    %c0_10 = arith.constant 0 : index
    %9 = vector.load %arg2[%c1, %c0_9, %c0_10] : memref<3x32x32xf32, #tpu.memory_space<vmem>>, vector<1x32x32xf32>
    %10 = vector.shape_cast %9 : vector<1x32x32xf32> to vector<32x32xf32>
    %c2 = arith.constant 2 : index
    %c0_11 = arith.constant 0 : index
    %c0_12 = arith.constant 0 : index
    %11 = vector.load %arg2[%c2, %c0_11, %c0_12] : memref<3x32x32xf32, #tpu.memory_space<vmem>>, vector<1x32x32xf32>
    %12 = vector.shape_cast %11 : vector<1x32x32xf32> to vector<32x32xf32>
    %c1_13 = arith.constant 1 : index
    %c0_14 = arith.constant 0 : index
    %c0_15 = arith.constant 0 : index
    %13 = vector.load %arg3[%c1_13, %c0_14, %c0_15] : memref<2x1x32xf32, #tpu.memory_space<vmem>>, vector<1x1x32xf32>
    %14 = vector.shape_cast %13 : vector<1x1x32xf32> to vector<1x32xf32>
    %15 = vector.shape_cast %14 : vector<1x32xf32> to vector<1x32xf32>
    %16 = vector.broadcast %15 : vector<1x32xf32> to vector<8x32xf32>
    %c0_16 = arith.constant 0 : index
    %c0_17 = arith.constant 0 : index
    %17 = vector.load %arg4[%c0_16, %c0_17] : memref<40x128xf32, #tpu.memory_space<vmem>>, vector<40x128xf32>
    %18 = vector.extract_strided_slice %17 {offsets = [0, 0], sizes = [32, 128], strides = [1, 1]} : vector<40x128xf32> to vector<32x128xf32>
    %19 = vector.extract_strided_slice %17 {offsets = [32, 0], sizes = [1, 128], strides = [1, 1]} : vector<40x128xf32> to vector<1x128xf32>
    %20 = vector.extract_strided_slice %8 {offsets = [0, 0], sizes = [8, 32], strides = [1, 1]} : vector<64x32xf32> to vector<8x32xf32>
    %cst_18 = arith.constant 0.000000e+00 : f32
    %21 = vector.broadcast %cst_18 : f32 to vector<8x32xf32>
    %22 = arith.maximumf %20, %21 : vector<8x32xf32>
    %cst_19 = arith.constant dense<0.000000e+00> : vector<8x32xf32>
    %23 = tpu.matmul %22, %10, %cst_19 {dimension_numbers = #tpu.dot_dimension_numbers<[1], [0], [0], [1], [0, 0, 1, 1], [], []>} : vector<8x32xf32>, vector<32x32xf32>, vector<8x32xf32> -> vector<8x32xf32>
    %24 = arith.addf %23, %16 : vector<8x32xf32>
    %cst_20 = arith.constant 0.000000e+00 : f32
    %25 = vector.broadcast %cst_20 : f32 to vector<8x32xf32>
    %26 = arith.maximumf %24, %25 : vector<8x32xf32>
    %27 = vector.extract_strided_slice %8 {offsets = [8, 0], sizes = [8, 32], strides = [1, 1]} : vector<64x32xf32> to vector<8x32xf32>
    %cst_21 = arith.constant dense<0.000000e+00> : vector<8x32xf32>
    %28 = tpu.matmul %22, %3, %cst_21 {dimension_numbers = #tpu.dot_dimension_numbers<[1], [0], [0], [1], [0, 0, 1, 1], [], []>} : vector<8x32xf32>, vector<32x32xf32>, vector<8x32xf32> -> vector<8x32xf32>
    %29 = arith.addf %27, %28 : vector<8x32xf32>
    %cst_22 = arith.constant 0.000000e+00 : f32
    %30 = vector.broadcast %cst_22 : f32 to vector<8x32xf32>
    %31 = arith.maximumf %29, %30 : vector<8x32xf32>
    %cst_23 = arith.constant dense<0.000000e+00> : vector<8x32xf32>
    %32 = tpu.matmul %31, %10, %cst_23 {dimension_numbers = #tpu.dot_dimension_numbers<[1], [0], [0], [1], [0, 0, 1, 1], [], []>} : vector<8x32xf32>, vector<32x32xf32>, vector<8x32xf32> -> vector<8x32xf32>
    %cst_24 = arith.constant dense<0.000000e+00> : vector<8x32xf32>
    %33 = tpu.matmul %26, %12, %cst_24 {dimension_numbers = #tpu.dot_dimension_numbers<[1], [0], [0], [1], [0, 0, 1, 1], [], []>} : vector<8x32xf32>, vector<32x32xf32>, vector<8x32xf32> -> vector<8x32xf32>
    %34 = arith.addf %32, %33 : vector<8x32xf32>
    %35 = arith.addf %34, %16 : vector<8x32xf32>
    %cst_25 = arith.constant 0.000000e+00 : f32
    %36 = vector.broadcast %cst_25 : f32 to vector<8x32xf32>
    %37 = arith.maximumf %35, %36 : vector<8x32xf32>
    %38 = vector.extract_strided_slice %8 {offsets = [16, 0], sizes = [8, 32], strides = [1, 1]} : vector<64x32xf32> to vector<8x32xf32>
    %cst_26 = arith.constant dense<0.000000e+00> : vector<8x32xf32>
    %39 = tpu.matmul %31, %3, %cst_26 {dimension_numbers = #tpu.dot_dimension_numbers<[1], [0], [0], [1], [0, 0, 1, 1], [], []>} : vector<8x32xf32>, vector<32x32xf32>, vector<8x32xf32> -> vector<8x32xf32>
    %40 = arith.addf %38, %39 : vector<8x32xf32>
    %cst_27 = arith.constant 0.000000e+00 : f32
    %41 = vector.broadcast %cst_27 : f32 to vector<8x32xf32>
    %42 = arith.maximumf %40, %41 : vector<8x32xf32>
    %cst_28 = arith.constant dense<0.000000e+00> : vector<8x32xf32>
    %43 = tpu.matmul %42, %10, %cst_28 {dimension_numbers = #tpu.dot_dimension_numbers<[1], [0], [0], [1], [0, 0, 1, 1], [], []>} : vector<8x32xf32>, vector<32x32xf32>, vector<8x32xf32> -> vector<8x32xf32>
    %cst_29 = arith.constant dense<0.000000e+00> : vector<8x32xf32>
    %44 = tpu.matmul %37, %12, %cst_29 {dimension_numbers = #tpu.dot_dimension_numbers<[1], [0], [0], [1], [0, 0, 1, 1], [], []>} : vector<8x32xf32>, vector<32x32xf32>, vector<8x32xf32> -> vector<8x32xf32>
    %45 = arith.addf %43, %44 : vector<8x32xf32>
    %46 = arith.addf %45, %16 : vector<8x32xf32>
    %cst_30 = arith.constant 0.000000e+00 : f32
    %47 = vector.broadcast %cst_30 : f32 to vector<8x32xf32>
    %48 = arith.maximumf %46, %47 : vector<8x32xf32>
    %49 = vector.extract_strided_slice %8 {offsets = [24, 0], sizes = [8, 32], strides = [1, 1]} : vector<64x32xf32> to vector<8x32xf32>
    %cst_31 = arith.constant dense<0.000000e+00> : vector<8x32xf32>
    %50 = tpu.matmul %42, %3, %cst_31 {dimension_numbers = #tpu.dot_dimension_numbers<[1], [0], [0], [1], [0, 0, 1, 1], [], []>} : vector<8x32xf32>, vector<32x32xf32>, vector<8x32xf32> -> vector<8x32xf32>
    %51 = arith.addf %49, %50 : vector<8x32xf32>
    %cst_32 = arith.constant 0.000000e+00 : f32
    %52 = vector.broadcast %cst_32 : f32 to vector<8x32xf32>
    %53 = arith.maximumf %51, %52 : vector<8x32xf32>
    %cst_33 = arith.constant dense<0.000000e+00> : vector<8x32xf32>
    %54 = tpu.matmul %53, %10, %cst_33 {dimension_numbers = #tpu.dot_dimension_numbers<[1], [0], [0], [1], [0, 0, 1, 1], [], []>} : vector<8x32xf32>, vector<32x32xf32>, vector<8x32xf32> -> vector<8x32xf32>
    %cst_34 = arith.constant dense<0.000000e+00> : vector<8x32xf32>
    %55 = tpu.matmul %48, %12, %cst_34 {dimension_numbers = #tpu.dot_dimension_numbers<[1], [0], [0], [1], [0, 0, 1, 1], [], []>} : vector<8x32xf32>, vector<32x32xf32>, vector<8x32xf32> -> vector<8x32xf32>
    %56 = arith.addf %54, %55 : vector<8x32xf32>
    %57 = arith.addf %56, %16 : vector<8x32xf32>
    %cst_35 = arith.constant 0.000000e+00 : f32
    %58 = vector.broadcast %cst_35 : f32 to vector<8x32xf32>
    %59 = arith.maximumf %57, %58 : vector<8x32xf32>
    %60 = vector.extract_strided_slice %8 {offsets = [32, 0], sizes = [8, 32], strides = [1, 1]} : vector<64x32xf32> to vector<8x32xf32>
    %cst_36 = arith.constant dense<0.000000e+00> : vector<8x32xf32>
    %61 = tpu.matmul %53, %3, %cst_36 {dimension_numbers = #tpu.dot_dimension_numbers<[1], [0], [0], [1], [0, 0, 1, 1], [], []>} : vector<8x32xf32>, vector<32x32xf32>, vector<8x32xf32> -> vector<8x32xf32>
    %62 = arith.addf %60, %61 : vector<8x32xf32>
    %cst_37 = arith.constant 0.000000e+00 : f32
    %63 = vector.broadcast %cst_37 : f32 to vector<8x32xf32>
    %64 = arith.maximumf %62, %63 : vector<8x32xf32>
    %cst_38 = arith.constant dense<0.000000e+00> : vector<8x32xf32>
    %65 = tpu.matmul %64, %10, %cst_38 {dimension_numbers = #tpu.dot_dimension_numbers<[1], [0], [0], [1], [0, 0, 1, 1], [], []>} : vector<8x32xf32>, vector<32x32xf32>, vector<8x32xf32> -> vector<8x32xf32>
    %cst_39 = arith.constant dense<0.000000e+00> : vector<8x32xf32>
    %66 = tpu.matmul %59, %12, %cst_39 {dimension_numbers = #tpu.dot_dimension_numbers<[1], [0], [0], [1], [0, 0, 1, 1], [], []>} : vector<8x32xf32>, vector<32x32xf32>, vector<8x32xf32> -> vector<8x32xf32>
    %67 = arith.addf %65, %66 : vector<8x32xf32>
    %68 = arith.addf %67, %16 : vector<8x32xf32>
    %cst_40 = arith.constant 0.000000e+00 : f32
    %69 = vector.broadcast %cst_40 : f32 to vector<8x32xf32>
    %70 = arith.maximumf %68, %69 : vector<8x32xf32>
    %71 = vector.extract_strided_slice %8 {offsets = [40, 0], sizes = [8, 32], strides = [1, 1]} : vector<64x32xf32> to vector<8x32xf32>
    %cst_41 = arith.constant dense<0.000000e+00> : vector<8x32xf32>
    %72 = tpu.matmul %64, %3, %cst_41 {dimension_numbers = #tpu.dot_dimension_numbers<[1], [0], [0], [1], [0, 0, 1, 1], [], []>} : vector<8x32xf32>, vector<32x32xf32>, vector<8x32xf32> -> vector<8x32xf32>
    %73 = arith.addf %71, %72 : vector<8x32xf32>
    %cst_42 = arith.constant 0.000000e+00 : f32
    %74 = vector.broadcast %cst_42 : f32 to vector<8x32xf32>
    %75 = arith.maximumf %73, %74 : vector<8x32xf32>
    %cst_43 = arith.constant dense<0.000000e+00> : vector<8x32xf32>
    %76 = tpu.matmul %75, %10, %cst_43 {dimension_numbers = #tpu.dot_dimension_numbers<[1], [0], [0], [1], [0, 0, 1, 1], [], []>} : vector<8x32xf32>, vector<32x32xf32>, vector<8x32xf32> -> vector<8x32xf32>
    %cst_44 = arith.constant dense<0.000000e+00> : vector<8x32xf32>
    %77 = tpu.matmul %70, %12, %cst_44 {dimension_numbers = #tpu.dot_dimension_numbers<[1], [0], [0], [1], [0, 0, 1, 1], [], []>} : vector<8x32xf32>, vector<32x32xf32>, vector<8x32xf32> -> vector<8x32xf32>
    %78 = arith.addf %76, %77 : vector<8x32xf32>
    %79 = arith.addf %78, %16 : vector<8x32xf32>
    %cst_45 = arith.constant 0.000000e+00 : f32
    %80 = vector.broadcast %cst_45 : f32 to vector<8x32xf32>
    %81 = arith.maximumf %79, %80 : vector<8x32xf32>
    %82 = vector.extract_strided_slice %8 {offsets = [48, 0], sizes = [8, 32], strides = [1, 1]} : vector<64x32xf32> to vector<8x32xf32>
    %cst_46 = arith.constant dense<0.000000e+00> : vector<8x32xf32>
    %83 = tpu.matmul %75, %3, %cst_46 {dimension_numbers = #tpu.dot_dimension_numbers<[1], [0], [0], [1], [0, 0, 1, 1], [], []>} : vector<8x32xf32>, vector<32x32xf32>, vector<8x32xf32> -> vector<8x32xf32>
    %84 = arith.addf %82, %83 : vector<8x32xf32>
    %cst_47 = arith.constant 0.000000e+00 : f32
    %85 = vector.broadcast %cst_47 : f32 to vector<8x32xf32>
    %86 = arith.maximumf %84, %85 : vector<8x32xf32>
    %cst_48 = arith.constant dense<0.000000e+00> : vector<8x32xf32>
    %87 = tpu.matmul %86, %10, %cst_48 {dimension_numbers = #tpu.dot_dimension_numbers<[1], [0], [0], [1], [0, 0, 1, 1], [], []>} : vector<8x32xf32>, vector<32x32xf32>, vector<8x32xf32> -> vector<8x32xf32>
    %cst_49 = arith.constant dense<0.000000e+00> : vector<8x32xf32>
    %88 = tpu.matmul %81, %12, %cst_49 {dimension_numbers = #tpu.dot_dimension_numbers<[1], [0], [0], [1], [0, 0, 1, 1], [], []>} : vector<8x32xf32>, vector<32x32xf32>, vector<8x32xf32> -> vector<8x32xf32>
    %89 = arith.addf %87, %88 : vector<8x32xf32>
    %90 = arith.addf %89, %16 : vector<8x32xf32>
    %cst_50 = arith.constant 0.000000e+00 : f32
    %91 = vector.broadcast %cst_50 : f32 to vector<8x32xf32>
    %92 = arith.maximumf %90, %91 : vector<8x32xf32>
    %93 = vector.extract_strided_slice %8 {offsets = [56, 0], sizes = [8, 32], strides = [1, 1]} : vector<64x32xf32> to vector<8x32xf32>
    %cst_51 = arith.constant dense<0.000000e+00> : vector<8x32xf32>
    %94 = tpu.matmul %86, %3, %cst_51 {dimension_numbers = #tpu.dot_dimension_numbers<[1], [0], [0], [1], [0, 0, 1, 1], [], []>} : vector<8x32xf32>, vector<32x32xf32>, vector<8x32xf32> -> vector<8x32xf32>
    %95 = arith.addf %93, %94 : vector<8x32xf32>
    %cst_52 = arith.constant 0.000000e+00 : f32
    %96 = vector.broadcast %cst_52 : f32 to vector<8x32xf32>
    %97 = arith.maximumf %95, %96 : vector<8x32xf32>
    %cst_53 = arith.constant dense<0.000000e+00> : vector<8x32xf32>
    %98 = tpu.matmul %97, %10, %cst_53 {dimension_numbers = #tpu.dot_dimension_numbers<[1], [0], [0], [1], [0, 0, 1, 1], [], []>} : vector<8x32xf32>, vector<32x32xf32>, vector<8x32xf32> -> vector<8x32xf32>
    %cst_54 = arith.constant dense<0.000000e+00> : vector<8x32xf32>
    %99 = tpu.matmul %92, %12, %cst_54 {dimension_numbers = #tpu.dot_dimension_numbers<[1], [0], [0], [1], [0, 0, 1, 1], [], []>} : vector<8x32xf32>, vector<32x32xf32>, vector<8x32xf32> -> vector<8x32xf32>
    %100 = arith.addf %98, %99 : vector<8x32xf32>
    %101 = arith.addf %100, %16 : vector<8x32xf32>
    %cst_55 = arith.constant 0.000000e+00 : f32
    %102 = vector.broadcast %cst_55 : f32 to vector<8x32xf32>
    %103 = arith.maximumf %101, %102 : vector<8x32xf32>
    %cst_56 = arith.constant dense<0.000000e+00> : vector<8x128xf32>
    %104 = tpu.matmul %103, %18, %cst_56 {dimension_numbers = #tpu.dot_dimension_numbers<[1], [0], [0], [1], [0, 0, 1, 1], [], []>} : vector<8x32xf32>, vector<32x128xf32>, vector<8x128xf32> -> vector<8x128xf32>
    %105 = vector.broadcast %19 : vector<1x128xf32> to vector<8x128xf32>
    %106 = arith.addf %104, %105 : vector<8x128xf32>
    %107 = arith.negf %106 : vector<8x128xf32>
    %108 = math.exp %107 : vector<8x128xf32>
    %cst_57 = arith.constant 1.000000e+00 : f32
    %109 = vector.broadcast %cst_57 : f32 to vector<8x128xf32>
    %110 = arith.addf %109, %108 : vector<8x128xf32>
    %111 = arith.divf %109, %110 : vector<8x128xf32>
    %c0_58 = arith.constant 0 : index
    %c0_59 = arith.constant 0 : index
    %112 = vector.load %arg5[%c0_58, %c0_59] : memref<8x128xf32, #tpu.memory_space<vmem>>, vector<8x128xf32>
    tpu.vector_store %arg5[%c0_58, %c0_59], %111 {strides = array<i32>} : memref<8x128xf32, #tpu.memory_space<vmem>>, vector<8x128xf32>,
    return
  }
}

</mosaic_0001>

<llo_original>
// kernel: rnn_model_forward.1
$region0: #{rnn_model_forward.1}
  #allocation0 [shape = 'u32[]', space=smem, size = 0x4, offset = 0x4, fixed_abs, tag = 'smem constant byte address 0x4 - core index']
  #allocation1 [shape = 'u32[144,128]{1,0:T(1,128)}', space=vmem, size = 0x12000, scoped, tag = 'internal scratch']
  %s0 = inlined_call_operand.vmem [shape: f32[64,16], index: 0, kind: input, shape index: {}]
  %s1 = inlined_call_operand.vmem [shape: f32[16,32], index: 1, kind: input, shape index: {}]
  %s2 = inlined_call_operand.vmem [shape: f32[3,32,32], index: 2, kind: input, shape index: {}]
  %s3 = inlined_call_operand.vmem [shape: f32[2,1,32], index: 3, kind: input, shape index: {}]
  %s4 = inlined_call_operand.vmem [shape: f32[40,128], index: 4, kind: input, shape index: {}]
  %s5 = inlined_call_operand.vmem [shape: f32[8,128], index: 5, kind: output, shape index: {}]
  %s6 = sld [smem:[#allocation0]]
  $region30: #{rnn_model_forward.1} parent=0
    _
  %s8 = ssub.s32 1, %s6
  %s9 = scalar_select 0, %s8, %s6
  // Predicated region
  $region2: #{rnn_model_forward.1} parent=0 // pred_check
    _
  $region3: #{rnn_model_forward.1} parent=0 // pred_check_branch
    %11 = sbr.rel (0) target = $region5
  $region4: #{rnn_model_forward.1} parent=0 // pred_region
    _
  $region5: #{rnn_model_forward.1} parent=0 // pred_fallthru
    _
  // Predicated region
  $region6: #{rnn_model_forward.1} parent=0 // pred_check
    _
  $region7: #{rnn_model_forward.1} parent=0 // pred_check_branch
    %13 = sbr.rel (0) target = $region9
  $region8: #{rnn_model_forward.1} parent=0 // pred_region
    _
  $region9: #{rnn_model_forward.1} parent=0 // pred_fallthru
    _
  // Predicated region
  $region10: #{rnn_model_forward.1} parent=0 // pred_check
    _
  $region11: #{rnn_model_forward.1} parent=0 // pred_check_branch
    %15 = sbr.rel (0) target = $region13
  $region12: #{rnn_model_forward.1} parent=0 // pred_region
    _
  $region13: #{rnn_model_forward.1} parent=0 // pred_fallthru
    _
  // Predicated region
  $region14: #{rnn_model_forward.1} parent=0 // pred_check
    _
  $region15: #{rnn_model_forward.1} parent=0 // pred_check_branch
    %17 = sbr.rel (0) target = $region17
  $region16: #{rnn_model_forward.1} parent=0 // pred_region
    _
  $region17: #{rnn_model_forward.1} parent=0 // pred_fallthru
    _
  // Predicated region
  $region18: #{rnn_model_forward.1} parent=0 // pred_check
    _
  $region19: #{rnn_model_forward.1} parent=0 // pred_check_branch
    %19 = sbr.rel (0) target = $region21
  $region20: #{rnn_model_forward.1} parent=0 // pred_region
    _
  $region21: #{rnn_model_forward.1} parent=0 // pred_fallthru
    _
  %v20 = vld [vmem:[%s0] sm:$0xff]
  %v21 = vld [vmem:[%s0 + $0x8] sm:$0xff]
  %v22 = vld [vmem:[%s0 + $0x10] sm:$0xff]
  %v23 = vld [vmem:[%s0 + $0x18] sm:$0xff]
  %v24 = vld [vmem:[%s0 + $0x20] sm:$0xff]
  %v25 = vld [vmem:[%s0 + $0x28] sm:$0xff]
  %v26 = vld [vmem:[%s0 + $0x30] sm:$0xff]
  %v27 = vld [vmem:[%s0 + $0x38] sm:$0xff]
  %v28 = vld [vmem:[%s1] sm:$0xff]
  %v29 = vld [vmem:[%s1 + $0x8] sm:$0xff]
  %v30 = vld [vmem:[%s2] sm:$0xff]
  %v31 = vld [vmem:[%s2 + $0x8] sm:$0xff]
  %v32 = vld [vmem:[%s2 + $0x10] sm:$0xff]
  %v33 = vld [vmem:[%s2 + $0x18] sm:$0xff]
  %v34 = vld [vmem:[%s3] sm:$0x1]
  %v36 = vlaneseq
  %v37 = vshrl.u32 %v36, 7
  %v38 = vsub.s32 0, %v37
  %v39 = vrot.slane %v34, %v38
  %vm41 = vcmask 130048
  %v43 = vsel %vm41, %v20, 0
  %v46 = vsel %vm41, %v21, 0
  %v49 = vsel %vm41, %v22, 0
  %v52 = vsel %vm41, %v23, 0
  %v55 = vsel %vm41, %v24, 0
  %v58 = vsel %vm41, %v25, 0
  %v61 = vsel %vm41, %v26, 0
  %v64 = vsel %vm41, %v27, 0
  %66 = vmatprep.subr.mxu0 0.0
  %67 = vmatpush1.msra.mxu0 %v28
  %68 = vmatprep.subr.mxu0 0.0
  %69 = vmatpush1.msra.mxu0 %v29
  %70 = vmatprep.subr.mxu0 0.0
  %71 = vmatpush1.msra.mxu0 0.0
  %72 = vmatprep.subr.mxu0 0.0
  %73 = vmatpush1.msra.mxu0 0.0
  %74 = vmatprep.subr.mxu0 0.0
  %75 = vmatpush1.msra.mxu0 0.0
  %76 = vmatprep.subr.mxu0 0.0
  %77 = vmatpush1.msra.mxu0 0.0
  %78 = vmatprep.subr.mxu0 0.0
  %79 = vmatpush1.msra.mxu0 0.0
  %80 = vmatprep.subr.mxu0 0.0
  %81 = vmatpush1.msra.mxu0 0.0
  %82 = vmatprep.subr.mxu0 0.0
  %83 = vmatpush1.msra.mxu0 0.0
  %84 = vmatprep.subr.mxu0 0.0
  %85 = vmatpush1.msra.mxu0 0.0
  %86 = vmatprep.subr.mxu0 0.0
  %87 = vmatpush1.msra.mxu0 0.0
  %88 = vmatprep.subr.mxu0 0.0
  %89 = vmatpush1.msra.mxu0 0.0
  %90 = vmatprep.subr.mxu0 0.0
  %91 = vmatpush1.msra.mxu0 0.0
  %92 = vmatprep.subr.mxu0 0.0
  %93 = vmatpush1.msra.mxu0 0.0
  %94 = vmatprep.subr.mxu0 0.0
  %95 = vmatpush1.msra.mxu0 0.0
  %96 = vmatprep.subr.mxu0 0.0
  %97 = vmatpush1.msra.mxu0 0.0
  %98 = vmatprep.subr.mxu0 0.0
  %99 = vmatpush1.msra.mxu0 0.0
  %100 = vmatprep.subr.mxu0 0.0
  %101 = vmatpush1.msra.mxu0 0.0
  %102 = vmatprep.subr.mxu0 0.0
  %103 = vmatpush1.msra.mxu0 0.0
  %104 = vmatprep.subr.mxu0 0.0
  %105 = vmatpush1.msra.mxu0 0.0
  %106 = vmatprep.subr.mxu0 0.0
  %107 = vmatpush1.msra.mxu0 0.0
  %108 = vmatprep.subr.mxu0 0.0
  %109 = vmatpush1.msra.mxu0 0.0
  %110 = vmatprep.subr.mxu0 0.0
  %111 = vmatpush1.msra.mxu0 0.0
  %112 = vmatprep.subr.mxu0 0.0
  %113 = vmatpush1.msra.mxu0 0.0
  %114 = vmatprep.subr.mxu0 0.0
  %115 = vmatpush1.msra.mxu0 0.0
  %116 = vmatprep.subr.mxu0 0.0
  %117 = vmatpush1.msra.mxu0 0.0
  %118 = vmatprep.subr.mxu0 0.0
  %119 = vmatpush1.msra.mxu0 0.0
  %120 = vmatprep.subr.mxu0 0.0
  %121 = vmatpush1.msra.mxu0 0.0
  %122 = vmatprep.subr.mxu0 0.0
  %123 = vmatpush1.msra.mxu0 0.0
  %124 = vmatprep.subr.mxu0 0.0
  %125 = vmatpush1.msra.mxu0 0.0
  %126 = vmatprep.subr.mxu0 0.0
  %127 = vmatpush1.msra.mxu0 0.0
  %128 = vmatprep.subr.mxu0 0.0
  %129 = vmatpush1.msra.mxu0 0.0
  %130 = vmatprep.mubr.f32.mxu0 0.0
  %131 = vmatmul.mubr.f32.gmra.mrb[0].mxu0 %v43
  %v132 = vpop.f32.mrb[0].mxu0
  %v133 = vadd.f32 %v39, %v132
  %v134 = vpop.f32.mrb[0].mxu0
  %135 = vmatprep.mubr.f32.mxu0 0.0
  %136 = vmatmul.mubr.f32.gmra.mrb[0].mxu0 %v46
  %v137 = vpop.f32.mrb[0].mxu0
  %v138 = vadd.f32 %v39, %v137
  %v139 = vpop.f32.mrb[0].mxu0
  %140 = vmatprep.mubr.f32.mxu0 0.0
  %141 = vmatmul.mubr.f32.gmra.mrb[0].mxu0 %v49
  %v142 = vpop.f32.mrb[0].mxu0
  %v143 = vadd.f32 %v39, %v142
  %v144 = vpop.f32.mrb[0].mxu0
  %145 = vmatprep.mubr.f32.mxu0 0.0
  %146 = vmatmul.mubr.f32.gmra.mrb[0].mxu0 %v52
  %v147 = vpop.f32.mrb[0].mxu0
  %v148 = vadd.f32 %v39, %v147
  %v149 = vpop.f32.mrb[0].mxu0
  %150 = vmatprep.mubr.f32.mxu0 0.0
  %151 = vmatmul.mubr.f32.gmra.mrb[0].mxu0 %v55
  %v152 = vpop.f32.mrb[0].mxu0
  %v153 = vadd.f32 %v39, %v152
  %v154 = vpop.f32.mrb[0].mxu0
  %155 = vmatprep.mubr.f32.mxu0 0.0
  %156 = vmatmul.mubr.f32.gmra.mrb[0].mxu0 %v58
  %v157 = vpop.f32.mrb[0].mxu0
  %v158 = vadd.f32 %v39, %v157
  %v159 = vpop.f32.mrb[0].mxu0
  %160 = vmatprep.mubr.f32.mxu0 0.0
  %161 = vmatmul.mubr.f32.gmra.mrb[0].mxu0 %v61
  %v162 = vpop.f32.mrb[0].mxu0
  %v163 = vadd.f32 %v39, %v162
  %v164 = vpop.f32.mrb[0].mxu0
  %165 = vmatprep.mubr.f32.mxu0 0.0
  %166 = vmatmul.mubr.f32.gmra.mrb[0].mxu0 %v64
  %v167 = vpop.f32.mrb[0].mxu0
  %v168 = vadd.f32 %v39, %v167
  %v169 = vpop.f32.mrb[0].mxu0
  %170 = vdwg.mxu0
  %s171 = scalar_lea.vmem %s2, 32
  %v172 = vld [vmem:[%s171] sm:$0xff]
  %v173 = vld [vmem:[%s171 + $0x8] sm:$0xff]
  %v174 = vld [vmem:[%s171 + $0x10] sm:$0xff]
  %v175 = vld [vmem:[%s171 + $0x18] sm:$0xff]
  %s176 = scalar_lea.vmem %s2, 64
  %v177 = vld [vmem:[%s176] sm:$0xff]
  %v178 = vld [vmem:[%s176 + $0x8] sm:$0xff]
  %v179 = vld [vmem:[%s176 + $0x10] sm:$0xff]
  %v180 = vld [vmem:[%s176 + $0x18] sm:$0xff]
  %s181 = scalar_lea.vmem %s3, 1
  %v182 = vld [vmem:[%s181] sm:$0x1]
  %v184 = vlaneseq
  %v185 = vshrl.u32 %v184, 7
  %v186 = vsub.s32 0, %v185
  %v187 = vrot.slane %v182, %v186
  %v189 = vld [vmem:[%s4] sm:$0xff]
  %v190 = vld [vmem:[%s4 + $0x8] sm:$0xff]
  %v191 = vld [vmem:[%s4 + $0x10] sm:$0xff]
  %v192 = vld [vmem:[%s4 + $0x18] sm:$0xff]
  %v193 = vld [vmem:[%s4 + $0x20] sm:$0xff]
  %v194 = vmax.f32 %v133, 0.0
  %vm195 = vcmask 261120
  %v197 = vsel %vm195, %v194, 0
  %199 = vmatprep.subr.mxu0 0.0
  %200 = vmatpush1.msra.mxu0 %v172
  %201 = vmatprep.subr.mxu0 0.0
  %202 = vmatpush1.msra.mxu0 %v173
  %203 = vmatprep.subr.mxu0 0.0
  %204 = vmatpush1.msra.mxu0 %v174
  %205 = vmatprep.subr.mxu0 0.0
  %206 = vmatpush1.msra.mxu0 %v175
  %207 = vmatprep.subr.mxu0 0.0
  %208 = vmatpush1.msra.mxu0 0.0
  %209 = vmatprep.subr.mxu0 0.0
  %210 = vmatpush1.msra.mxu0 0.0
  %211 = vmatprep.subr.mxu0 0.0
  %212 = vmatpush1.msra.mxu0 0.0
  %213 = vmatprep.subr.mxu0 0.0
  %214 = vmatpush1.msra.mxu0 0.0
  %215 = vmatprep.subr.mxu0 0.0
  %216 = vmatpush1.msra.mxu0 0.0
  %217 = vmatprep.subr.mxu0 0.0
  %218 = vmatpush1.msra.mxu0 0.0
  %219 = vmatprep.subr.mxu0 0.0
  %220 = vmatpush1.msra.mxu0 0.0
  %221 = vmatprep.subr.mxu0 0.0
  %222 = vmatpush1.msra.mxu0 0.0
  %223 = vmatprep.subr.mxu0 0.0
  %224 = vmatpush1.msra.mxu0 0.0
  %225 = vmatprep.subr.mxu0 0.0
  %226 = vmatpush1.msra.mxu0 0.0
  %227 = vmatprep.subr.mxu0 0.0
  %228 = vmatpush1.msra.mxu0 0.0
  %229 = vmatprep.subr.mxu0 0.0
  %230 = vmatpush1.msra.mxu0 0.0
  %231 = vmatprep.subr.mxu0 0.0
  %232 = vmatpush1.msra.mxu0 0.0
  %233 = vmatprep.subr.mxu0 0.0
  %234 = vmatpush1.msra.mxu0 0.0
  %235 = vmatprep.subr.mxu0 0.0
  %236 = vmatpush1.msra.mxu0 0.0
  %237 = vmatprep.subr.mxu0 0.0
  %238 = vmatpush1.msra.mxu0 0.0
  %239 = vmatprep.subr.mxu0 0.0
  %240 = vmatpush1.msra.mxu0 0.0
  %241 = vmatprep.subr.mxu0 0.0
  %242 = vmatpush1.msra.mxu0 0.0
  %243 = vmatprep.subr.mxu0 0.0
  %244 = vmatpush1.msra.mxu0 0.0
  %245 = vmatprep.subr.mxu0 0.0
  %246 = vmatpush1.msra.mxu0 0.0
  %247 = vmatprep.subr.mxu0 0.0
  %248 = vmatpush1.msra.mxu0 0.0
  %249 = vmatprep.subr.mxu0 0.0
  %250 = vmatpush1.msra.mxu0 0.0
  %251 = vmatprep.subr.mxu0 0.0
  %252 = vmatpush1.msra.mxu0 0.0
  %253 = vmatprep.subr.mxu0 0.0
  %254 = vmatpush1.msra.mxu0 0.0
  %255 = vmatprep.subr.mxu0 0.0
  %256 = vmatpush1.msra.mxu0 0.0
  %257 = vmatprep.subr.mxu0 0.0
  %258 = vmatpush1.msra.mxu0 0.0
  %259 = vmatprep.subr.mxu0 0.0
  %260 = vmatpush1.msra.mxu0 0.0
  %261 = vmatprep.subr.mxu0 0.0
  %262 = vmatpush1.msra.mxu0 0.0
  %263 = vmatprep.mubr.f32.mxu0 0.0
  %264 = vmatmul.mubr.f32.gmra.mrb[0].mxu0 %v197
  %v265 = vpop.f32.mrb[0].mxu0
  %v266 = vadd.f32 %v187, %v265
  %v267 = vpop.f32.mrb[0].mxu0
  %268 = vdwg.mxu0
  %v269 = vmax.f32 %v266, 0.0
  %270 = vmatprep.subr.mxu0 0.0
  %271 = vmatpush1.msra.mxu0 %v30
  %272 = vmatprep.subr.mxu0 0.0
  %273 = vmatpush1.msra.mxu0 %v31
  %274 = vmatprep.subr.mxu0 0.0
  %275 = vmatpush1.msra.mxu0 %v32
  %276 = vmatprep.subr.mxu0 0.0
  %277 = vmatpush1.msra.mxu0 %v33
  %278 = vmatprep.subr.mxu0 0.0
  %279 = vmatpush1.msra.mxu0 0.0
  %280 = vmatprep.subr.mxu0 0.0
  %281 = vmatpush1.msra.mxu0 0.0
  %282 = vmatprep.subr.mxu0 0.0
  %283 = vmatpush1.msra.mxu0 0.0
  %284 = vmatprep.subr.mxu0 0.0
  %285 = vmatpush1.msra.mxu0 0.0
  %286 = vmatprep.subr.mxu0 0.0
  %287 = vmatpush1.msra.mxu0 0.0
  %288 = vmatprep.subr.mxu0 0.0
  %289 = vmatpush1.msra.mxu0 0.0
  %290 = vmatprep.subr.mxu0 0.0
  %291 = vmatpush1.msra.mxu0 0.0
  %292 = vmatprep.subr.mxu0 0.0
  %293 = vmatpush1.msra.mxu0 0.0
  %294 = vmatprep.subr.mxu0 0.0
  %295 = vmatpush1.msra.mxu0 0.0
  %296 = vmatprep.subr.mxu0 0.0
  %297 = vmatpush1.msra.mxu0 0.0
  %298 = vmatprep.subr.mxu0 0.0
  %299 = vmatpush1.msra.mxu0 0.0
  %300 = vmatprep.subr.mxu0 0.0
  %301 = vmatpush1.msra.mxu0 0.0
  %302 = vmatprep.subr.mxu0 0.0
  %303 = vmatpush1.msra.mxu0 0.0
  %304 = vmatprep.subr.mxu0 0.0
  %305 = vmatpush1.msra.mxu0 0.0
  %306 = vmatprep.subr.mxu0 0.0
  %307 = vmatpush1.msra.mxu0 0.0
  %308 = vmatprep.subr.mxu0 0.0
  %309 = vmatpush1.msra.mxu0 0.0
  %310 = vmatprep.subr.mxu0 0.0
  %311 = vmatpush1.msra.mxu0 0.0
  %312 = vmatprep.subr.mxu0 0.0
  %313 = vmatpush1.msra.mxu0 0.0
  %314 = vmatprep.subr.mxu0 0.0
  %315 = vmatpush1.msra.mxu0 0.0
  %316 = vmatprep.subr.mxu0 0.0
  %317 = vmatpush1.msra.mxu0 0.0
  %318 = vmatprep.subr.mxu0 0.0
  %319 = vmatpush1.msra.mxu0 0.0
  %320 = vmatprep.subr.mxu0 0.0
  %321 = vmatpush1.msra.mxu0 0.0
  %322 = vmatprep.subr.mxu0 0.0
  %323 = vmatpush1.msra.mxu0 0.0
  %324 = vmatprep.subr.mxu0 0.0
  %325 = vmatpush1.msra.mxu0 0.0
  %326 = vmatprep.subr.mxu0 0.0
  %327 = vmatpush1.msra.mxu0 0.0
  %328 = vmatprep.subr.mxu0 0.0
  %329 = vmatpush1.msra.mxu0 0.0
  %330 = vmatprep.subr.mxu0 0.0
  %331 = vmatpush1.msra.mxu0 0.0
  %332 = vmatprep.subr.mxu0 0.0
  %333 = vmatpush1.msra.mxu0 0.0
  %334 = vmatprep.mubr.f32.mxu0 0.0
  %335 = vmatmul.mubr.f32.gmra.mrb[0].mxu0 %v197
  %v336 = vpop.f32.mrb[0].mxu0
  %v337 = vadd.f32 0.0, %v336
  %v338 = vpop.f32.mrb[0].mxu0
  %339 = vdwg.mxu0
  %v340 = vadd.f32 %v138, %v337
  %v341 = vmax.f32 %v340, 0.0
  %v343 = vsel %vm195, %v269, 0
  %345 = vmatprep.subr.mxu0 0.0
  %346 = vmatpush1.msra.mxu0 %v177
  %347 = vmatprep.subr.mxu0 0.0
  %348 = vmatpush1.msra.mxu0 %v178
  %349 = vmatprep.subr.mxu0 0.0
  %350 = vmatpush1.msra.mxu0 %v179
  %351 = vmatprep.subr.mxu0 0.0
  %352 = vmatpush1.msra.mxu0 %v180
  %353 = vmatprep.subr.mxu0 0.0
  %354 = vmatpush1.msra.mxu0 0.0
  %355 = vmatprep.subr.mxu0 0.0
  %356 = vmatpush1.msra.mxu0 0.0
  %357 = vmatprep.subr.mxu0 0.0
  %358 = vmatpush1.msra.mxu0 0.0
  %359 = vmatprep.subr.mxu0 0.0
  %360 = vmatpush1.msra.mxu0 0.0
  %361 = vmatprep.subr.mxu0 0.0
  %362 = vmatpush1.msra.mxu0 0.0
  %363 = vmatprep.subr.mxu0 0.0
  %364 = vmatpush1.msra.mxu0 0.0
  %365 = vmatprep.subr.mxu0 0.0
  %366 = vmatpush1.msra.mxu0 0.0
  %367 = vmatprep.subr.mxu0 0.0
  %368 = vmatpush1.msra.mxu0 0.0
  %369 = vmatprep.subr.mxu0 0.0
  %370 = vmatpush1.msra.mxu0 0.0
  %371 = vmatprep.subr.mxu0 0.0
  %372 = vmatpush1.msra.mxu0 0.0
  %373 = vmatprep.subr.mxu0 0.0
  %374 = vmatpush1.msra.mxu0 0.0
  %375 = vmatprep.subr.mxu0 0.0
  %376 = vmatpush1.msra.mxu0 0.0
  %377 = vmatprep.subr.mxu0 0.0
  %378 = vmatpush1.msra.mxu0 0.0
  %379 = vmatprep.subr.mxu0 0.0
  %380 = vmatpush1.msra.mxu0 0.0
  %381 = vmatprep.subr.mxu0 0.0
  %382 = vmatpush1.msra.mxu0 0.0
  %383 = vmatprep.subr.mxu0 0.0
  %384 = vmatpush1.msra.mxu0 0.0
  %385 = vmatprep.subr.mxu0 0.0
  %386 = vmatpush1.msra.mxu0 0.0
  %387 = vmatprep.subr.mxu0 0.0
  %388 = vmatpush1.msra.mxu0 0.0
  %389 = vmatprep.subr.mxu0 0.0
  %390 = vmatpush1.msra.mxu0 0.0
  %391 = vmatprep.subr.mxu0 0.0
  %392 = vmatpush1.msra.mxu0 0.0
  %393 = vmatprep.subr.mxu0 0.0
  %394 = vmatpush1.msra.mxu0 0.0
  %395 = vmatprep.subr.mxu0 0.0
  %396 = vmatpush1.msra.mxu0 0.0
  %397 = vmatprep.subr.mxu0 0.0
  %398 = vmatpush1.msra.mxu0 0.0
  %399 = vmatprep.subr.mxu0 0.0
  %400 = vmatpush1.msra.mxu0 0.0
  %401 = vmatprep.subr.mxu0 0.0
  %402 = vmatpush1.msra.mxu0 0.0
  %403 = vmatprep.subr.mxu0 0.0
  %404 = vmatpush1.msra.mxu0 0.0
  %405 = vmatprep.subr.mxu0 0.0
  %406 = vmatpush1.msra.mxu0 0.0
  %407 = vmatprep.subr.mxu0 0.0
  %408 = vmatpush1.msra.mxu0 0.0
  %409 = vmatprep.mubr.f32.mxu0 0.0
  %410 = vmatmul.mubr.f32.gmra.mrb[0].mxu0 %v343
  %v411 = vpop.f32.mrb[0].mxu0
  %v412 = vadd.f32 0.0, %v411
  %v413 = vpop.f32.mrb[0].mxu0
  %414 = vdwg.mxu0
  %v416 = vsel %vm195, %v341, 0
  %418 = vmatprep.subr.mxu0 0.0
  %419 = vmatpush1.msra.mxu0 %v172
  %420 = vmatprep.subr.mxu0 0.0
  %421 = vmatpush1.msra.mxu0 %v173
  %422 = vmatprep.subr.mxu0 0.0
  %423 = vmatpush1.msra.mxu0 %v174
  %424 = vmatprep.subr.mxu0 0.0
  %425 = vmatpush1.msra.mxu0 %v175
  %426 = vmatprep.subr.mxu0 0.0
  %427 = vmatpush1.msra.mxu0 0.0
  %428 = vmatprep.subr.mxu0 0.0
  %429 = vmatpush1.msra.mxu0 0.0
  %430 = vmatprep.subr.mxu0 0.0
  %431 = vmatpush1.msra.mxu0 0.0
  %432 = vmatprep.subr.mxu0 0.0
  %433 = vmatpush1.msra.mxu0 0.0
  %434 = vmatprep.subr.mxu0 0.0
  %435 = vmatpush1.msra.mxu0 0.0
  %436 = vmatprep.subr.mxu0 0.0
  %437 = vmatpush1.msra.mxu0 0.0
  %438 = vmatprep.subr.mxu0 0.0
  %439 = vmatpush1.msra.mxu0 0.0
  %440 = vmatprep.subr.mxu0 0.0
  %441 = vmatpush1.msra.mxu0 0.0
  %442 = vmatprep.subr.mxu0 0.0
  %443 = vmatpush1.msra.mxu0 0.0
  %444 = vmatprep.subr.mxu0 0.0
  %445 = vmatpush1.msra.mxu0 0.0
  %446 = vmatprep.subr.mxu0 0.0
  %447 = vmatpush1.msra.mxu0 0.0
  %448 = vmatprep.subr.mxu0 0.0
  %449 = vmatpush1.msra.mxu0 0.0
  %450 = vmatprep.subr.mxu0 0.0
  %451 = vmatpush1.msra.mxu0 0.0
  %452 = vmatprep.subr.mxu0 0.0
  %453 = vmatpush1.msra.mxu0 0.0
  %454 = vmatprep.subr.mxu0 0.0
  %455 = vmatpush1.msra.mxu0 0.0
  %456 = vmatprep.subr.mxu0 0.0
  %457 = vmatpush1.msra.mxu0 0.0
  %458 = vmatprep.subr.mxu0 0.0
  %459 = vmatpush1.msra.mxu0 0.0
  %460 = vmatprep.subr.mxu0 0.0
  %461 = vmatpush1.msra.mxu0 0.0
  %462 = vmatprep.subr.mxu0 0.0
  %463 = vmatpush1.msra.mxu0 0.0
  %464 = vmatprep.subr.mxu0 0.0
  %465 = vmatpush1.msra.mxu0 0.0
  %466 = vmatprep.subr.mxu0 0.0
  %467 = vmatpush1.msra.mxu0 0.0
  %468 = vmatprep.subr.mxu0 0.0
  %469 = vmatpush1.msra.mxu0 0.0
  %470 = vmatprep.subr.mxu0 0.0
  %471 = vmatpush1.msra.mxu0 0.0
  %472 = vmatprep.subr.mxu0 0.0
  %473 = vmatpush1.msra.mxu0 0.0
  %474 = vmatprep.subr.mxu0 0.0
  %475 = vmatpush1.msra.mxu0 0.0
  %476 = vmatprep.subr.mxu0 0.0
  %477 = vmatpush1.msra.mxu0 0.0
  %478 = vmatprep.subr.mxu0 0.0
  %479 = vmatpush1.msra.mxu0 0.0
  %480 = vmatprep.subr.mxu0 0.0
  %481 = vmatpush1.msra.mxu0 0.0
  %482 = vmatprep.mubr.f32.mxu0 0.0
  %483 = vmatmul.mubr.f32.gmra.mrb[0].mxu0 %v416
  %v484 = vpop.f32.mrb[0].mxu0
  %v485 = vadd.f32 %v412, %v484
  %v486 = vpop.f32.mrb[0].mxu0
  %487 = vdwg.mxu0
  %v488 = vadd.f32 %v485, %v187
  %v489 = vmax.f32 %v488, 0.0
  %490 = vmatprep.subr.mxu0 0.0
  %491 = vmatpush1.msra.mxu0 %v30
  %492 = vmatprep.subr.mxu0 0.0
  %493 = vmatpush1.msra.mxu0 %v31
  %494 = vmatprep.subr.mxu0 0.0
  %495 = vmatpush1.msra.mxu0 %v32
  %496 = vmatprep.subr.mxu0 0.0
  %497 = vmatpush1.msra.mxu0 %v33
  %498 = vmatprep.subr.mxu0 0.0
  %499 = vmatpush1.msra.mxu0 0.0
  %500 = vmatprep.subr.mxu0 0.0
  %501 = vmatpush1.msra.mxu0 0.0
  %502 = vmatprep.subr.mxu0 0.0
  %503 = vmatpush1.msra.mxu0 0.0
  %504 = vmatprep.subr.mxu0 0.0
  %505 = vmatpush1.msra.mxu0 0.0
  %506 = vmatprep.subr.mxu0 0.0
  %507 = vmatpush1.msra.mxu0 0.0
  %508 = vmatprep.subr.mxu0 0.0
  %509 = vmatpush1.msra.mxu0 0.0
  %510 = vmatprep.subr.mxu0 0.0
  %511 = vmatpush1.msra.mxu0 0.0
  %512 = vmatprep.subr.mxu0 0.0
  %513 = vmatpush1.msra.mxu0 0.0
  %514 = vmatprep.subr.mxu0 0.0
  %515 = vmatpush1.msra.mxu0 0.0
  %516 = vmatprep.subr.mxu0 0.0
  %517 = vmatpush1.msra.mxu0 0.0
  %518 = vmatprep.subr.mxu0 0.0
  %519 = vmatpush1.msra.mxu0 0.0
  %520 = vmatprep.subr.mxu0 0.0
  %521 = vmatpush1.msra.mxu0 0.0
  %522 = vmatprep.subr.mxu0 0.0
  %523 = vmatpush1.msra.mxu0 0.0
  %524 = vmatprep.subr.mxu0 0.0
  %525 = vmatpush1.msra.mxu0 0.0
  %526 = vmatprep.subr.mxu0 0.0
  %527 = vmatpush1.msra.mxu0 0.0
  %528 = vmatprep.subr.mxu0 0.0
  %529 = vmatpush1.msra.mxu0 0.0
  %530 = vmatprep.subr.mxu0 0.0
  %531 = vmatpush1.msra.mxu0 0.0
  %532 = vmatprep.subr.mxu0 0.0
  %533 = vmatpush1.msra.mxu0 0.0
  %534 = vmatprep.subr.mxu0 0.0
  %535 = vmatpush1.msra.mxu0 0.0
  %536 = vmatprep.subr.mxu0 0.0
  %537 = vmatpush1.msra.mxu0 0.0
  %538 = vmatprep.subr.mxu0 0.0
  %539 = vmatpush1.msra.mxu0 0.0
  %540 = vmatprep.subr.mxu0 0.0
  %541 = vmatpush1.msra.mxu0 0.0
  %542 = vmatprep.subr.mxu0 0.0
  %543 = vmatpush1.msra.mxu0 0.0
  %544 = vmatprep.subr.mxu0 0.0
  %545 = vmatpush1.msra.mxu0 0.0
  %546 = vmatprep.subr.mxu0 0.0
  %547 = vmatpush1.msra.mxu0 0.0
  %548 = vmatprep.subr.mxu0 0.0
  %549 = vmatpush1.msra.mxu0 0.0
  %550 = vmatprep.subr.mxu0 0.0
  %551 = vmatpush1.msra.mxu0 0.0
  %552 = vmatprep.subr.mxu0 0.0
  %553 = vmatpush1.msra.mxu0 0.0
  %554 = vmatprep.mubr.f32.mxu0 0.0
  %555 = vmatmul.mubr.f32.gmra.mrb[0].mxu0 %v416
  %v556 = vpop.f32.mrb[0].mxu0
  %v557 = vadd.f32 0.0, %v556
  %v558 = vpop.f32.mrb[0].mxu0
  %559 = vdwg.mxu0
  %v560 = vadd.f32 %v143, %v557
  %v561 = vmax.f32 %v560, 0.0
  %v563 = vsel %vm195, %v489, 0
  %565 = vmatprep.subr.mxu0 0.0
  %566 = vmatpush1.msra.mxu0 %v177
  %567 = vmatprep.subr.mxu0 0.0
  %568 = vmatpush1.msra.mxu0 %v178
  %569 = vmatprep.subr.mxu0 0.0
  %570 = vmatpush1.msra.mxu0 %v179
  %571 = vmatprep.subr.mxu0 0.0
  %572 = vmatpush1.msra.mxu0 %v180
  %573 = vmatprep.subr.mxu0 0.0
  %574 = vmatpush1.msra.mxu0 0.0
  %575 = vmatprep.subr.mxu0 0.0
  %576 = vmatpush1.msra.mxu0 0.0
  %577 = vmatprep.subr.mxu0 0.0
  %578 = vmatpush1.msra.mxu0 0.0
  %579 = vmatprep.subr.mxu0 0.0
  %580 = vmatpush1.msra.mxu0 0.0
  %581 = vmatprep.subr.mxu0 0.0
  %582 = vmatpush1.msra.mxu0 0.0
  %583 = vmatprep.subr.mxu0 0.0
  %584 = vmatpush1.msra.mxu0 0.0
  %585 = vmatprep.subr.mxu0 0.0
  %586 = vmatpush1.msra.mxu0 0.0
  %587 = vmatprep.subr.mxu0 0.0
  %588 = vmatpush1.msra.mxu0 0.0
  %589 = vmatprep.subr.mxu0 0.0
  %590 = vmatpush1.msra.mxu0 0.0
  %591 = vmatprep.subr.mxu0 0.0
  %592 = vmatpush1.msra.mxu0 0.0
  %593 = vmatprep.subr.mxu0 0.0
  %594 = vmatpush1.msra.mxu0 0.0
  %595 = vmatprep.subr.mxu0 0.0
  %596 = vmatpush1.msra.mxu0 0.0
  %597 = vmatprep.subr.mxu0 0.0
  %598 = vmatpush1.msra.mxu0 0.0
  %599 = vmatprep.subr.mxu0 0.0
  %600 = vmatpush1.msra.mxu0 0.0
  %601 = vmatprep.subr.mxu0 0.0
  %602 = vmatpush1.msra.mxu0 0.0
  %603 = vmatprep.subr.mxu0 0.0
  %604 = vmatpush1.msra.mxu0 0.0
  %605 = vmatprep.subr.mxu0 0.0
  %606 = vmatpush1.msra.mxu0 0.0
  %607 = vmatprep.subr.mxu0 0.0
  %608 = vmatpush1.msra.mxu0 0.0
  %609 = vmatprep.subr.mxu0 0.0
  %610 = vmatpush1.msra.mxu0 0.0
  %611 = vmatprep.subr.mxu0 0.0
  %612 = vmatpush1.msra.mxu0 0.0
  %613 = vmatprep.subr.mxu0 0.0
  %614 = vmatpush1.msra.mxu0 0.0
  %615 = vmatprep.subr.mxu0 0.0
  %616 = vmatpush1.msra.mxu0 0.0
  %617 = vmatprep.subr.mxu0 0.0
  %618 = vmatpush1.msra.mxu0 0.0
  %619 = vmatprep.subr.mxu0 0.0
  %620 = vmatpush1.msra.mxu0 0.0
  %621 = vmatprep.subr.mxu0 0.0
  %622 = vmatpush1.msra.mxu0 0.0
  %623 = vmatprep.subr.mxu0 0.0
  %624 = vmatpush1.msra.mxu0 0.0
  %625 = vmatprep.subr.mxu0 0.0
  %626 = vmatpush1.msra.mxu0 0.0
  %627 = vmatprep.subr.mxu0 0.0
  %628 = vmatpush1.msra.mxu0 0.0
  %629 = vmatprep.mubr.f32.mxu0 0.0
  %630 = vmatmul.mubr.f32.gmra.mrb[0].mxu0 %v563
  %v631 = vpop.f32.mrb[0].mxu0
  %v632 = vadd.f32 0.0, %v631
  %v633 = vpop.f32.mrb[0].mxu0
  %634 = vdwg.mxu0
  %v636 = vsel %vm195, %v561, 0
  %638 = vmatprep.subr.mxu0 0.0
  %639 = vmatpush1.msra.mxu0 %v172
  %640 = vmatprep.subr.mxu0 0.0
  %641 = vmatpush1.msra.mxu0 %v173
  %642 = vmatprep.subr.mxu0 0.0
  %643 = vmatpush1.msra.mxu0 %v174
  %644 = vmatprep.subr.mxu0 0.0
  %645 = vmatpush1.msra.mxu0 %v175
  %646 = vmatprep.subr.mxu0 0.0
  %647 = vmatpush1.msra.mxu0 0.0
  %648 = vmatprep.subr.mxu0 0.0
  %649 = vmatpush1.msra.mxu0 0.0
  %650 = vmatprep.subr.mxu0 0.0
  %651 = vmatpush1.msra.mxu0 0.0
  %652 = vmatprep.subr.mxu0 0.0
  %653 = vmatpush1.msra.mxu0 0.0
  %654 = vmatprep.subr.mxu0 0.0
  %655 = vmatpush1.msra.mxu0 0.0
  %656 = vmatprep.subr.mxu0 0.0
  %657 = vmatpush1.msra.mxu0 0.0
  %658 = vmatprep.subr.mxu0 0.0
  %659 = vmatpush1.msra.mxu0 0.0
  %660 = vmatprep.subr.mxu0 0.0
  %661 = vmatpush1.msra.mxu0 0.0
  %662 = vmatprep.subr.mxu0 0.0
  %663 = vmatpush1.msra.mxu0 0.0
  %664 = vmatprep.subr.mxu0 0.0
  %665 = vmatpush1.msra.mxu0 0.0
  %666 = vmatprep.subr.mxu0 0.0
  %667 = vmatpush1.msra.mxu0 0.0
  %668 = vmatprep.subr.mxu0 0.0
  %669 = vmatpush1.msra.mxu0 0.0
  %670 = vmatprep.subr.mxu0 0.0
  %671 = vmatpush1.msra.mxu0 0.0
  %672 = vmatprep.subr.mxu0 0.0
  %673 = vmatpush1.msra.mxu0 0.0
  %674 = vmatprep.subr.mxu0 0.0
  %675 = vmatpush1.msra.mxu0 0.0
  %676 = vmatprep.subr.mxu0 0.0
  %677 = vmatpush1.msra.mxu0 0.0
  %678 = vmatprep.subr.mxu0 0.0
  %679 = vmatpush1.msra.mxu0 0.0
  %680 = vmatprep.subr.mxu0 0.0
  %681 = vmatpush1.msra.mxu0 0.0
  %682 = vmatprep.subr.mxu0 0.0
  %683 = vmatpush1.msra.mxu0 0.0
  %684 = vmatprep.subr.mxu0 0.0
  %685 = vmatpush1.msra.mxu0 0.0
  %686 = vmatprep.subr.mxu0 0.0
  %687 = vmatpush1.msra.mxu0 0.0
  %688 = vmatprep.subr.mxu0 0.0
  %689 = vmatpush1.msra.mxu0 0.0
  %690 = vmatprep.subr.mxu0 0.0
  %691 = vmatpush1.msra.mxu0 0.0
  %692 = vmatprep.subr.mxu0 0.0
  %693 = vmatpush1.msra.mxu0 0.0
  %694 = vmatprep.subr.mxu0 0.0
  %695 = vmatpush1.msra.mxu0 0.0
  %696 = vmatprep.subr.mxu0 0.0
  %697 = vmatpush1.msra.mxu0 0.0
  %698 = vmatprep.subr.mxu0 0.0
  %699 = vmatpush1.msra.mxu0 0.0
  %700 = vmatprep.subr.mxu0 0.0
  %701 = vmatpush1.msra.mxu0 0.0
  %702 = vmatprep.mubr.f32.mxu0 0.0
  %703 = vmatmul.mubr.f32.gmra.mrb[0].mxu0 %v636
  %v704 = vpop.f32.mrb[0].mxu0
  %v705 = vadd.f32 %v632, %v704
  %v706 = vpop.f32.mrb[0].mxu0
  %707 = vdwg.mxu0
  %v708 = vadd.f32 %v705, %v187
  %v709 = vmax.f32 %v708, 0.0
  %710 = vmatprep.subr.mxu0 0.0
  %711 = vmatpush1.msra.mxu0 %v30
  %712 = vmatprep.subr.mxu0 0.0
  %713 = vmatpush1.msra.mxu0 %v31
  %714 = vmatprep.subr.mxu0 0.0
  %715 = vmatpush1.msra.mxu0 %v32
  %716 = vmatprep.subr.mxu0 0.0
  %717 = vmatpush1.msra.mxu0 %v33
  %718 = vmatprep.subr.mxu0 0.0
  %719 = vmatpush1.msra.mxu0 0.0
  %720 = vmatprep.subr.mxu0 0.0
  %721 = vmatpush1.msra.mxu0 0.0
  %722 = vmatprep.subr.mxu0 0.0
  %723 = vmatpush1.msra.mxu0 0.0
  %724 = vmatprep.subr.mxu0 0.0
  %725 = vmatpush1.msra.mxu0 0.0
  %726 = vmatprep.subr.mxu0 0.0
  %727 = vmatpush1.msra.mxu0 0.0
  %728 = vmatprep.subr.mxu0 0.0
  %729 = vmatpush1.msra.mxu0 0.0
  %730 = vmatprep.subr.mxu0 0.0
  %731 = vmatpush1.msra.mxu0 0.0
  %732 = vmatprep.subr.mxu0 0.0
  %733 = vmatpush1.msra.mxu0 0.0
  %734 = vmatprep.subr.mxu0 0.0
  %735 = vmatpush1.msra.mxu0 0.0
  %736 = vmatprep.subr.mxu0 0.0
  %737 = vmatpush1.msra.mxu0 0.0
  %738 = vmatprep.subr.mxu0 0.0
  %739 = vmatpush1.msra.mxu0 0.0
  %740 = vmatprep.subr.mxu0 0.0
  %741 = vmatpush1.msra.mxu0 0.0
  %742 = vmatprep.subr.mxu0 0.0
  %743 = vmatpush1.msra.mxu0 0.0
  %744 = vmatprep.subr.mxu0 0.0
  %745 = vmatpush1.msra.mxu0 0.0
  %746 = vmatprep.subr.mxu0 0.0
  %747 = vmatpush1.msra.mxu0 0.0
  %748 = vmatprep.subr.mxu0 0.0
  %749 = vmatpush1.msra.mxu0 0.0
  %750 = vmatprep.subr.mxu0 0.0
  %751 = vmatpush1.msra.mxu0 0.0
  %752 = vmatprep.subr.mxu0 0.0
  %753 = vmatpush1.msra.mxu0 0.0
  %754 = vmatprep.subr.mxu0 0.0
  %755 = vmatpush1.msra.mxu0 0.0
  %756 = vmatprep.subr.mxu0 0.0
  %757 = vmatpush1.msra.mxu0 0.0
  %758 = vmatprep.subr.mxu0 0.0
  %759 = vmatpush1.msra.mxu0 0.0
  %760 = vmatprep.subr.mxu0 0.0
  %761 = vmatpush1.msra.mxu0 0.0
  %762 = vmatprep.subr.mxu0 0.0
  %763 = vmatpush1.msra.mxu0 0.0
  %764 = vmatprep.subr.mxu0 0.0
  %765 = vmatpush1.msra.mxu0 0.0
  %766 = vmatprep.subr.mxu0 0.0
  %767 = vmatpush1.msra.mxu0 0.0
  %768 = vmatprep.subr.mxu0 0.0
  %769 = vmatpush1.msra.mxu0 0.0
  %770 = vmatprep.subr.mxu0 0.0
  %771 = vmatpush1.msra.mxu0 0.0
  %772 = vmatprep.subr.mxu0 0.0
  %773 = vmatpush1.msra.mxu0 0.0
  %774 = vmatprep.mubr.f32.mxu0 0.0
  %775 = vmatmul.mubr.f32.gmra.mrb[0].mxu0 %v636
  %v776 = vpop.f32.mrb[0].mxu0
  %v777 = vadd.f32 0.0, %v776
  %v778 = vpop.f32.mrb[0].mxu0
  %779 = vdwg.mxu0
  %v780 = vadd.f32 %v148, %v777
  %v781 = vmax.f32 %v780, 0.0
  %v783 = vsel %vm195, %v709, 0
  %785 = vmatprep.subr.mxu0 0.0
  %786 = vmatpush1.msra.mxu0 %v177
  %787 = vmatprep.subr.mxu0 0.0
  %788 = vmatpush1.msra.mxu0 %v178
  %789 = vmatprep.subr.mxu0 0.0
  %790 = vmatpush1.msra.mxu0 %v179
  %791 = vmatprep.subr.mxu0 0.0
  %792 = vmatpush1.msra.mxu0 %v180
  %793 = vmatprep.subr.mxu0 0.0
  %794 = vmatpush1.msra.mxu0 0.0
  %795 = vmatprep.subr.mxu0 0.0
  %796 = vmatpush1.msra.mxu0 0.0
  %797 = vmatprep.subr.mxu0 0.0
  %798 = vmatpush1.msra.mxu0 0.0
  %799 = vmatprep.subr.mxu0 0.0
  %800 = vmatpush1.msra.mxu0 0.0
  %801 = vmatprep.subr.mxu0 0.0
  %802 = vmatpush1.msra.mxu0 0.0
  %803 = vmatprep.subr.mxu0 0.0
  %804 = vmatpush1.msra.mxu0 0.0
  %805 = vmatprep.subr.mxu0 0.0
  %806 = vmatpush1.msra.mxu0 0.0
  %807 = vmatprep.subr.mxu0 0.0
  %808 = vmatpush1.msra.mxu0 0.0
  %809 = vmatprep.subr.mxu0 0.0
  %810 = vmatpush1.msra.mxu0 0.0
  %811 = vmatprep.subr.mxu0 0.0
  %812 = vmatpush1.msra.mxu0 0.0
  %813 = vmatprep.subr.mxu0 0.0
  %814 = vmatpush1.msra.mxu0 0.0
  %815 = vmatprep.subr.mxu0 0.0
  %816 = vmatpush1.msra.mxu0 0.0
  %817 = vmatprep.subr.mxu0 0.0
  %818 = vmatpush1.msra.mxu0 0.0
  %819 = vmatprep.subr.mxu0 0.0
  %820 = vmatpush1.msra.mxu0 0.0
  %821 = vmatprep.subr.mxu0 0.0
  %822 = vmatpush1.msra.mxu0 0.0
  %823 = vmatprep.subr.mxu0 0.0
  %824 = vmatpush1.msra.mxu0 0.0
  %825 = vmatprep.subr.mxu0 0.0
  %826 = vmatpush1.msra.mxu0 0.0
  %827 = vmatprep.subr.mxu0 0.0
  %828 = vmatpush1.msra.mxu0 0.0
  %829 = vmatprep.subr.mxu0 0.0
  %830 = vmatpush1.msra.mxu0 0.0
  %831 = vmatprep.subr.mxu0 0.0
  %832 = vmatpush1.msra.mxu0 0.0
  %833 = vmatprep.subr.mxu0 0.0
  %834 = vmatpush1.msra.mxu0 0.0
  %835 = vmatprep.subr.mxu0 0.0
  %836 = vmatpush1.msra.mxu0 0.0
  %837 = vmatprep.subr.mxu0 0.0
  %838 = vmatpush1.msra.mxu0 0.0
  %839 = vmatprep.subr.mxu0 0.0
  %840 = vmatpush1.msra.mxu0 0.0
  %841 = vmatprep.subr.mxu0 0.0
  %842 = vmatpush1.msra.mxu0 0.0
  %843 = vmatprep.subr.mxu0 0.0
  %844 = vmatpush1.msra.mxu0 0.0
  %845 = vmatprep.subr.mxu0 0.0
  %846 = vmatpush1.msra.mxu0 0.0
  %847 = vmatprep.subr.mxu0 0.0
  %848 = vmatpush1.msra.mxu0 0.0
  %849 = vmatprep.mubr.f32.mxu0 0.0
  %850 = vmatmul.mubr.f32.gmra.mrb[0].mxu0 %v783
  %v851 = vpop.f32.mrb[0].mxu0
  %v852 = vadd.f32 0.0, %v851
  %v853 = vpop.f32.mrb[0].mxu0
  %854 = vdwg.mxu0
  %v856 = vsel %vm195, %v781, 0
  %858 = vmatprep.subr.mxu0 0.0
  %859 = vmatpush1.msra.mxu0 %v172
  %860 = vmatprep.subr.mxu0 0.0
  %861 = vmatpush1.msra.mxu0 %v173
  %862 = vmatprep.subr.mxu0 0.0
  %863 = vmatpush1.msra.mxu0 %v174
  %864 = vmatprep.subr.mxu0 0.0
  %865 = vmatpush1.msra.mxu0 %v175
  %866 = vmatprep.subr.mxu0 0.0
  %867 = vmatpush1.msra.mxu0 0.0
  %868 = vmatprep.subr.mxu0 0.0
  %869 = vmatpush1.msra.mxu0 0.0
  %870 = vmatprep.subr.mxu0 0.0
  %871 = vmatpush1.msra.mxu0 0.0
  %872 = vmatprep.subr.mxu0 0.0
  %873 = vmatpush1.msra.mxu0 0.0
  %874 = vmatprep.subr.mxu0 0.0
  %875 = vmatpush1.msra.mxu0 0.0
  %876 = vmatprep.subr.mxu0 0.0
  %877 = vmatpush1.msra.mxu0 0.0
  %878 = vmatprep.subr.mxu0 0.0
  %879 = vmatpush1.msra.mxu0 0.0
  %880 = vmatprep.subr.mxu0 0.0
  %881 = vmatpush1.msra.mxu0 0.0
  %882 = vmatprep.subr.mxu0 0.0
  %883 = vmatpush1.msra.mxu0 0.0
  %884 = vmatprep.subr.mxu0 0.0
  %885 = vmatpush1.msra.mxu0 0.0
  %886 = vmatprep.subr.mxu0 0.0
  %887 = vmatpush1.msra.mxu0 0.0
  %888 = vmatprep.subr.mxu0 0.0
  %889 = vmatpush1.msra.mxu0 0.0
  %890 = vmatprep.subr.mxu0 0.0
  %891 = vmatpush1.msra.mxu0 0.0
  %892 = vmatprep.subr.mxu0 0.0
  %893 = vmatpush1.msra.mxu0 0.0
  %894 = vmatprep.subr.mxu0 0.0
  %895 = vmatpush1.msra.mxu0 0.0
  %896 = vmatprep.subr.mxu0 0.0
  %897 = vmatpush1.msra.mxu0 0.0
  %898 = vmatprep.subr.mxu0 0.0
  %899 = vmatpush1.msra.mxu0 0.0
  %900 = vmatprep.subr.mxu0 0.0
  %901 = vmatpush1.msra.mxu0 0.0
  %902 = vmatprep.subr.mxu0 0.0
  %903 = vmatpush1.msra.mxu0 0.0
  %904 = vmatprep.subr.mxu0 0.0
  %905 = vmatpush1.msra.mxu0 0.0
  %906 = vmatprep.subr.mxu0 0.0
  %907 = vmatpush1.msra.mxu0 0.0
  %908 = vmatprep.subr.mxu0 0.0
  %909 = vmatpush1.msra.mxu0 0.0
  %910 = vmatprep.subr.mxu0 0.0
  %911 = vmatpush1.msra.mxu0 0.0
  %912 = vmatprep.subr.mxu0 0.0
  %913 = vmatpush1.msra.mxu0 0.0
  %914 = vmatprep.subr.mxu0 0.0
  %915 = vmatpush1.msra.mxu0 0.0
  %916 = vmatprep.subr.mxu0 0.0
  %917 = vmatpush1.msra.mxu0 0.0
  %918 = vmatprep.subr.mxu0 0.0
  %919 = vmatpush1.msra.mxu0 0.0
  %920 = vmatprep.subr.mxu0 0.0
  %921 = vmatpush1.msra.mxu0 0.0
  %922 = vmatprep.mubr.f32.mxu0 0.0
  %923 = vmatmul.mubr.f32.gmra.mrb[0].mxu0 %v856
  %v924 = vpop.f32.mrb[0].mxu0
  %v925 = vadd.f32 %v852, %v924
  %v926 = vpop.f32.mrb[0].mxu0
  %927 = vdwg.mxu0
  %v928 = vadd.f32 %v925, %v187
  %v929 = vmax.f32 %v928, 0.0
  %930 = vmatprep.subr.mxu0 0.0
  %931 = vmatpush1.msra.mxu0 %v30
  %932 = vmatprep.subr.mxu0 0.0
  %933 = vmatpush1.msra.mxu0 %v31
  %934 = vmatprep.subr.mxu0 0.0
  %935 = vmatpush1.msra.mxu0 %v32
  %936 = vmatprep.subr.mxu0 0.0
  %937 = vmatpush1.msra.mxu0 %v33
  %938 = vmatprep.subr.mxu0 0.0
  %939 = vmatpush1.msra.mxu0 0.0
  %940 = vmatprep.subr.mxu0 0.0
  %941 = vmatpush1.msra.mxu0 0.0
  %942 = vmatprep.subr.mxu0 0.0
  %943 = vmatpush1.msra.mxu0 0.0
  %944 = vmatprep.subr.mxu0 0.0
  %945 = vmatpush1.msra.mxu0 0.0
  %946 = vmatprep.subr.mxu0 0.0
  %947 = vmatpush1.msra.mxu0 0.0
  %948 = vmatprep.subr.mxu0 0.0
  %949 = vmatpush1.msra.mxu0 0.0
  %950 = vmatprep.subr.mxu0 0.0
  %951 = vmatpush1.msra.mxu0 0.0
  %952 = vmatprep.subr.mxu0 0.0
  %953 = vmatpush1.msra.mxu0 0.0
  %954 = vmatprep.subr.mxu0 0.0
  %955 = vmatpush1.msra.mxu0 0.0
  %956 = vmatprep.subr.mxu0 0.0
  %957 = vmatpush1.msra.mxu0 0.0
  %958 = vmatprep.subr.mxu0 0.0
  %959 = vmatpush1.msra.mxu0 0.0
  %960 = vmatprep.subr.mxu0 0.0
  %961 = vmatpush1.msra.mxu0 0.0
  %962 = vmatprep.subr.mxu0 0.0
  %963 = vmatpush1.msra.mxu0 0.0
  %964 = vmatprep.subr.mxu0 0.0
  %965 = vmatpush1.msra.mxu0 0.0
  %966 = vmatprep.subr.mxu0 0.0
  %967 = vmatpush1.msra.mxu0 0.0
  %968 = vmatprep.subr.mxu0 0.0
  %969 = vmatpush1.msra.mxu0 0.0
  %970 = vmatprep.subr.mxu0 0.0
  %971 = vmatpush1.msra.mxu0 0.0
  %972 = vmatprep.subr.mxu0 0.0
  %973 = vmatpush1.msra.mxu0 0.0
  %974 = vmatprep.subr.mxu0 0.0
  %975 = vmatpush1.msra.mxu0 0.0
  %976 = vmatprep.subr.mxu0 0.0
  %977 = vmatpush1.msra.mxu0 0.0
  %978 = vmatprep.subr.mxu0 0.0
  %979 = vmatpush1.msra.mxu0 0.0
  %980 = vmatprep.subr.mxu0 0.0
  %981 = vmatpush1.msra.mxu0 0.0
  %982 = vmatprep.subr.mxu0 0.0
  %983 = vmatpush1.msra.mxu0 0.0
  %984 = vmatprep.subr.mxu0 0.0
  %985 = vmatpush1.msra.mxu0 0.0
  %986 = vmatprep.subr.mxu0 0.0
  %987 = vmatpush1.msra.mxu0 0.0
  %988 = vmatprep.subr.mxu0 0.0
  %989 = vmatpush1.msra.mxu0 0.0
  %990 = vmatprep.subr.mxu0 0.0
  %991 = vmatpush1.msra.mxu0 0.0
  %992 = vmatprep.subr.mxu0 0.0
  %993 = vmatpush1.msra.mxu0 0.0
  %994 = vmatprep.mubr.f32.mxu0 0.0
  %995 = vmatmul.mubr.f32.gmra.mrb[0].mxu0 %v856
  %v996 = vpop.f32.mrb[0].mxu0
  %v997 = vadd.f32 0.0, %v996
  %v998 = vpop.f32.mrb[0].mxu0
  %999 = vdwg.mxu0
  %v1000 = vadd.f32 %v153, %v997
  %v1001 = vmax.f32 %v1000, 0.0
  %v1003 = vsel %vm195, %v929, 0
  %1005 = vmatprep.subr.mxu0 0.0
  %1006 = vmatpush1.msra.mxu0 %v177
  %1007 = vmatprep.subr.mxu0 0.0
  %1008 = vmatpush1.msra.mxu0 %v178
  %1009 = vmatprep.subr.mxu0 0.0
  %1010 = vmatpush1.msra.mxu0 %v179
  %1011 = vmatprep.subr.mxu0 0.0
  %1012 = vmatpush1.msra.mxu0 %v180
  %1013 = vmatprep.subr.mxu0 0.0
  %1014 = vmatpush1.msra.mxu0 0.0
  %1015 = vmatprep.subr.mxu0 0.0
  %1016 = vmatpush1.msra.mxu0 0.0
  %1017 = vmatprep.subr.mxu0 0.0
  %1018 = vmatpush1.msra.mxu0 0.0
  %1019 = vmatprep.subr.mxu0 0.0
  %1020 = vmatpush1.msra.mxu0 0.0
  %1021 = vmatprep.subr.mxu0 0.0
  %1022 = vmatpush1.msra.mxu0 0.0
  %1023 = vmatprep.subr.mxu0 0.0
  %1024 = vmatpush1.msra.mxu0 0.0
  %1025 = vmatprep.subr.mxu0 0.0
  %1026 = vmatpush1.msra.mxu0 0.0
  %1027 = vmatprep.subr.mxu0 0.0
  %1028 = vmatpush1.msra.mxu0 0.0
  %1029 = vmatprep.subr.mxu0 0.0
  %1030 = vmatpush1.msra.mxu0 0.0
  %1031 = vmatprep.subr.mxu0 0.0
  %1032 = vmatpush1.msra.mxu0 0.0
  %1033 = vmatprep.subr.mxu0 0.0
  %1034 = vmatpush1.msra.mxu0 0.0
  %1035 = vmatprep.subr.mxu0 0.0
  %1036 = vmatpush1.msra.mxu0 0.0
  %1037 = vmatprep.subr.mxu0 0.0
  %1038 = vmatpush1.msra.mxu0 0.0
  %1039 = vmatprep.subr.mxu0 0.0
  %1040 = vmatpush1.msra.mxu0 0.0
  %1041 = vmatprep.subr.mxu0 0.0
  %1042 = vmatpush1.msra.mxu0 0.0
  %1043 = vmatprep.subr.mxu0 0.0
  %1044 = vmatpush1.msra.mxu0 0.0
  %1045 = vmatprep.subr.mxu0 0.0
  %1046 = vmatpush1.msra.mxu0 0.0
  %1047 = vmatprep.subr.mxu0 0.0
  %1048 = vmatpush1.msra.mxu0 0.0
  %1049 = vmatprep.subr.mxu0 0.0
  %1050 = vmatpush1.msra.mxu0 0.0
  %1051 = vmatprep.subr.mxu0 0.0
  %1052 = vmatpush1.msra.mxu0 0.0
  %1053 = vmatprep.subr.mxu0 0.0
  %1054 = vmatpush1.msra.mxu0 0.0
  %1055 = vmatprep.subr.mxu0 0.0
  %1056 = vmatpush1.msra.mxu0 0.0
  %1057 = vmatprep.subr.mxu0 0.0
  %1058 = vmatpush1.msra.mxu0 0.0
  %1059 = vmatprep.subr.mxu0 0.0
  %1060 = vmatpush1.msra.mxu0 0.0
  %1061 = vmatprep.subr.mxu0 0.0
  %1062 = vmatpush1.msra.mxu0 0.0
  %1063 = vmatprep.subr.mxu0 0.0
  %1064 = vmatpush1.msra.mxu0 0.0
  %1065 = vmatprep.subr.mxu0 0.0
  %1066 = vmatpush1.msra.mxu0 0.0
  %1067 = vmatprep.subr.mxu0 0.0
  %1068 = vmatpush1.msra.mxu0 0.0
  %1069 = vmatprep.mubr.f32.mxu0 0.0
  %1070 = vmatmul.mubr.f32.gmra.mrb[0].mxu0 %v1003
  %v1071 = vpop.f32.mrb[0].mxu0
  %v1072 = vadd.f32 0.0, %v1071
  %v1073 = vpop.f32.mrb[0].mxu0
  %1074 = vdwg.mxu0
  %v1076 = vsel %vm195, %v1001, 0
  %1078 = vmatprep.subr.mxu0 0.0
  %1079 = vmatpush1.msra.mxu0 %v172
  %1080 = vmatprep.subr.mxu0 0.0
  %1081 = vmatpush1.msra.mxu0 %v173
  %1082 = vmatprep.subr.mxu0 0.0
  %1083 = vmatpush1.msra.mxu0 %v174
  %1084 = vmatprep.subr.mxu0 0.0
  %1085 = vmatpush1.msra.mxu0 %v175
  %1086 = vmatprep.subr.mxu0 0.0
  %1087 = vmatpush1.msra.mxu0 0.0
  %1088 = vmatprep.subr.mxu0 0.0
  %1089 = vmatpush1.msra.mxu0 0.0
  %1090 = vmatprep.subr.mxu0 0.0
  %1091 = vmatpush1.msra.mxu0 0.0
  %1092 = vmatprep.subr.mxu0 0.0
  %1093 = vmatpush1.msra.mxu0 0.0
  %1094 = vmatprep.subr.mxu0 0.0
  %1095 = vmatpush1.msra.mxu0 0.0
  %1096 = vmatprep.subr.mxu0 0.0
  %1097 = vmatpush1.msra.mxu0 0.0
  %1098 = vmatprep.subr.mxu0 0.0
  %1099 = vmatpush1.msra.mxu0 0.0
  %1100 = vmatprep.subr.mxu0 0.0
  %1101 = vmatpush1.msra.mxu0 0.0
  %1102 = vmatprep.subr.mxu0 0.0
  %1103 = vmatpush1.msra.mxu0 0.0
  %1104 = vmatprep.subr.mxu0 0.0
  %1105 = vmatpush1.msra.mxu0 0.0
  %1106 = vmatprep.subr.mxu0 0.0
  %1107 = vmatpush1.msra.mxu0 0.0
  %1108 = vmatprep.subr.mxu0 0.0
  %1109 = vmatpush1.msra.mxu0 0.0
  %1110 = vmatprep.subr.mxu0 0.0
  %1111 = vmatpush1.msra.mxu0 0.0
  %1112 = vmatprep.subr.mxu0 0.0
  %1113 = vmatpush1.msra.mxu0 0.0
  %1114 = vmatprep.subr.mxu0 0.0
  %1115 = vmatpush1.msra.mxu0 0.0
  %1116 = vmatprep.subr.mxu0 0.0
  %1117 = vmatpush1.msra.mxu0 0.0
  %1118 = vmatprep.subr.mxu0 0.0
  %1119 = vmatpush1.msra.mxu0 0.0
  %1120 = vmatprep.subr.mxu0 0.0
  %1121 = vmatpush1.msra.mxu0 0.0
  %1122 = vmatprep.subr.mxu0 0.0
  %1123 = vmatpush1.msra.mxu0 0.0
  %1124 = vmatprep.subr.mxu0 0.0
  %1125 = vmatpush1.msra.mxu0 0.0
  %1126 = vmatprep.subr.mxu0 0.0
  %1127 = vmatpush1.msra.mxu0 0.0
  %1128 = vmatprep.subr.mxu0 0.0
  %1129 = vmatpush1.msra.mxu0 0.0
  %1130 = vmatprep.subr.mxu0 0.0
  %1131 = vmatpush1.msra.mxu0 0.0
  %1132 = vmatprep.subr.mxu0 0.0
  %1133 = vmatpush1.msra.mxu0 0.0
  %1134 = vmatprep.subr.mxu0 0.0
  %1135 = vmatpush1.msra.mxu0 0.0
  %1136 = vmatprep.subr.mxu0 0.0
  %1137 = vmatpush1.msra.mxu0 0.0
  %1138 = vmatprep.subr.mxu0 0.0
  %1139 = vmatpush1.msra.mxu0 0.0
  %1140 = vmatprep.subr.mxu0 0.0
  %1141 = vmatpush1.msra.mxu0 0.0
  %1142 = vmatprep.mubr.f32.mxu0 0.0
  %1143 = vmatmul.mubr.f32.gmra.mrb[0].mxu0 %v1076
  %v1144 = vpop.f32.mrb[0].mxu0
  %v1145 = vadd.f32 %v1072, %v1144
  %v1146 = vpop.f32.mrb[0].mxu0
  %1147 = vdwg.mxu0
  %v1148 = vadd.f32 %v1145, %v187
  %v1149 = vmax.f32 %v1148, 0.0
  %1150 = vmatprep.subr.mxu0 0.0
  %1151 = vmatpush1.msra.mxu0 %v30
  %1152 = vmatprep.subr.mxu0 0.0
  %1153 = vmatpush1.msra.mxu0 %v31
  %1154 = vmatprep.subr.mxu0 0.0
  %1155 = vmatpush1.msra.mxu0 %v32
  %1156 = vmatprep.subr.mxu0 0.0
  %1157 = vmatpush1.msra.mxu0 %v33
  %1158 = vmatprep.subr.mxu0 0.0
  %1159 = vmatpush1.msra.mxu0 0.0
  %1160 = vmatprep.subr.mxu0 0.0
  %1161 = vmatpush1.msra.mxu0 0.0
  %1162 = vmatprep.subr.mxu0 0.0
  %1163 = vmatpush1.msra.mxu0 0.0
  %1164 = vmatprep.subr.mxu0 0.0
  %1165 = vmatpush1.msra.mxu0 0.0
  %1166 = vmatprep.subr.mxu0 0.0
  %1167 = vmatpush1.msra.mxu0 0.0
  %1168 = vmatprep.subr.mxu0 0.0
  %1169 = vmatpush1.msra.mxu0 0.0
  %1170 = vmatprep.subr.mxu0 0.0
  %1171 = vmatpush1.msra.mxu0 0.0
  %1172 = vmatprep.subr.mxu0 0.0
  %1173 = vmatpush1.msra.mxu0 0.0
  %1174 = vmatprep.subr.mxu0 0.0
  %1175 = vmatpush1.msra.mxu0 0.0
  %1176 = vmatprep.subr.mxu0 0.0
  %1177 = vmatpush1.msra.mxu0 0.0
  %1178 = vmatprep.subr.mxu0 0.0
  %1179 = vmatpush1.msra.mxu0 0.0
  %1180 = vmatprep.subr.mxu0 0.0
  %1181 = vmatpush1.msra.mxu0 0.0
  %1182 = vmatprep.subr.mxu0 0.0
  %1183 = vmatpush1.msra.mxu0 0.0
  %1184 = vmatprep.subr.mxu0 0.0
  %1185 = vmatpush1.msra.mxu0 0.0
  %1186 = vmatprep.subr.mxu0 0.0
  %1187 = vmatpush1.msra.mxu0 0.0
  %1188 = vmatprep.subr.mxu0 0.0
  %1189 = vmatpush1.msra.mxu0 0.0
  %1190 = vmatprep.subr.mxu0 0.0
  %1191 = vmatpush1.msra.mxu0 0.0
  %1192 = vmatprep.subr.mxu0 0.0
  %1193 = vmatpush1.msra.mxu0 0.0
  %1194 = vmatprep.subr.mxu0 0.0
  %1195 = vmatpush1.msra.mxu0 0.0
  %1196 = vmatprep.subr.mxu0 0.0
  %1197 = vmatpush1.msra.mxu0 0.0
  %1198 = vmatprep.subr.mxu0 0.0
  %1199 = vmatpush1.msra.mxu0 0.0
  %1200 = vmatprep.subr.mxu0 0.0
  %1201 = vmatpush1.msra.mxu0 0.0
  %1202 = vmatprep.subr.mxu0 0.0
  %1203 = vmatpush1.msra.mxu0 0.0
  %1204 = vmatprep.subr.mxu0 0.0
  %1205 = vmatpush1.msra.mxu0 0.0
  %1206 = vmatprep.subr.mxu0 0.0
  %1207 = vmatpush1.msra.mxu0 0.0
  %1208 = vmatprep.subr.mxu0 0.0
  %1209 = vmatpush1.msra.mxu0 0.0
  %1210 = vmatprep.subr.mxu0 0.0
  %1211 = vmatpush1.msra.mxu0 0.0
  %1212 = vmatprep.subr.mxu0 0.0
  %1213 = vmatpush1.msra.mxu0 0.0
  %1214 = vmatprep.mubr.f32.mxu0 0.0
  %1215 = vmatmul.mubr.f32.gmra.mrb[0].mxu0 %v1076
  %v1216 = vpop.f32.mrb[0].mxu0
  %v1217 = vadd.f32 0.0, %v1216
  %v1218 = vpop.f32.mrb[0].mxu0
  %1219 = vdwg.mxu0
  %v1220 = vadd.f32 %v158, %v1217
  %v1221 = vmax.f32 %v1220, 0.0
  %v1223 = vsel %vm195, %v1149, 0
  %1225 = vmatprep.subr.mxu0 0.0
  %1226 = vmatpush1.msra.mxu0 %v177
  %1227 = vmatprep.subr.mxu0 0.0
  %1228 = vmatpush1.msra.mxu0 %v178
  %1229 = vmatprep.subr.mxu0 0.0
  %1230 = vmatpush1.msra.mxu0 %v179
  %1231 = vmatprep.subr.mxu0 0.0
  %1232 = vmatpush1.msra.mxu0 %v180
  %1233 = vmatprep.subr.mxu0 0.0
  %1234 = vmatpush1.msra.mxu0 0.0
  %1235 = vmatprep.subr.mxu0 0.0
  %1236 = vmatpush1.msra.mxu0 0.0
  %1237 = vmatprep.subr.mxu0 0.0
  %1238 = vmatpush1.msra.mxu0 0.0
  %1239 = vmatprep.subr.mxu0 0.0
  %1240 = vmatpush1.msra.mxu0 0.0
  %1241 = vmatprep.subr.mxu0 0.0
  %1242 = vmatpush1.msra.mxu0 0.0
  %1243 = vmatprep.subr.mxu0 0.0
  %1244 = vmatpush1.msra.mxu0 0.0
  %1245 = vmatprep.subr.mxu0 0.0
  %1246 = vmatpush1.msra.mxu0 0.0
  %1247 = vmatprep.subr.mxu0 0.0
  %1248 = vmatpush1.msra.mxu0 0.0
  %1249 = vmatprep.subr.mxu0 0.0
  %1250 = vmatpush1.msra.mxu0 0.0
  %1251 = vmatprep.subr.mxu0 0.0
  %1252 = vmatpush1.msra.mxu0 0.0
  %1253 = vmatprep.subr.mxu0 0.0
  %1254 = vmatpush1.msra.mxu0 0.0
  %1255 = vmatprep.subr.mxu0 0.0
  %1256 = vmatpush1.msra.mxu0 0.0
  %1257 = vmatprep.subr.mxu0 0.0
  %1258 = vmatpush1.msra.mxu0 0.0
  %1259 = vmatprep.subr.mxu0 0.0
  %1260 = vmatpush1.msra.mxu0 0.0
  %1261 = vmatprep.subr.mxu0 0.0
  %1262 = vmatpush1.msra.mxu0 0.0
  %1263 = vmatprep.subr.mxu0 0.0
  %1264 = vmatpush1.msra.mxu0 0.0
  %1265 = vmatprep.subr.mxu0 0.0
  %1266 = vmatpush1.msra.mxu0 0.0
  %1267 = vmatprep.subr.mxu0 0.0
  %1268 = vmatpush1.msra.mxu0 0.0
  %1269 = vmatprep.subr.mxu0 0.0
  %1270 = vmatpush1.msra.mxu0 0.0
  %1271 = vmatprep.subr.mxu0 0.0
  %1272 = vmatpush1.msra.mxu0 0.0
  %1273 = vmatprep.subr.mxu0 0.0
  %1274 = vmatpush1.msra.mxu0 0.0
  %1275 = vmatprep.subr.mxu0 0.0
  %1276 = vmatpush1.msra.mxu0 0.0
  %1277 = vmatprep.subr.mxu0 0.0
  %1278 = vmatpush1.msra.mxu0 0.0
  %1279 = vmatprep.subr.mxu0 0.0
  %1280 = vmatpush1.msra.mxu0 0.0
  %1281 = vmatprep.subr.mxu0 0.0
  %1282 = vmatpush1.msra.mxu0 0.0
  %1283 = vmatprep.subr.mxu0 0.0
  %1284 = vmatpush1.msra.mxu0 0.0
  %1285 = vmatprep.subr.mxu0 0.0
  %1286 = vmatpush1.msra.mxu0 0.0
  %1287 = vmatprep.subr.mxu0 0.0
  %1288 = vmatpush1.msra.mxu0 0.0
  %1289 = vmatprep.mubr.f32.mxu0 0.0
  %1290 = vmatmul.mubr.f32.gmra.mrb[0].mxu0 %v1223
  %v1291 = vpop.f32.mrb[0].mxu0
  %v1292 = vadd.f32 0.0, %v1291
  %v1293 = vpop.f32.mrb[0].mxu0
  %1294 = vdwg.mxu0
  %v1296 = vsel %vm195, %v1221, 0
  %1298 = vmatprep.subr.mxu0 0.0
  %1299 = vmatpush1.msra.mxu0 %v172
  %1300 = vmatprep.subr.mxu0 0.0
  %1301 = vmatpush1.msra.mxu0 %v173
  %1302 = vmatprep.subr.mxu0 0.0
  %1303 = vmatpush1.msra.mxu0 %v174
  %1304 = vmatprep.subr.mxu0 0.0
  %1305 = vmatpush1.msra.mxu0 %v175
  %1306 = vmatprep.subr.mxu0 0.0
  %1307 = vmatpush1.msra.mxu0 0.0
  %1308 = vmatprep.subr.mxu0 0.0
  %1309 = vmatpush1.msra.mxu0 0.0
  %1310 = vmatprep.subr.mxu0 0.0
  %1311 = vmatpush1.msra.mxu0 0.0
  %1312 = vmatprep.subr.mxu0 0.0
  %1313 = vmatpush1.msra.mxu0 0.0
  %1314 = vmatprep.subr.mxu0 0.0
  %1315 = vmatpush1.msra.mxu0 0.0
  %1316 = vmatprep.subr.mxu0 0.0
  %1317 = vmatpush1.msra.mxu0 0.0
  %1318 = vmatprep.subr.mxu0 0.0
  %1319 = vmatpush1.msra.mxu0 0.0
  %1320 = vmatprep.subr.mxu0 0.0
  %1321 = vmatpush1.msra.mxu0 0.0
  %1322 = vmatprep.subr.mxu0 0.0
  %1323 = vmatpush1.msra.mxu0 0.0
  %1324 = vmatprep.subr.mxu0 0.0
  %1325 = vmatpush1.msra.mxu0 0.0
  %1326 = vmatprep.subr.mxu0 0.0
  %1327 = vmatpush1.msra.mxu0 0.0
  %1328 = vmatprep.subr.mxu0 0.0
  %1329 = vmatpush1.msra.mxu0 0.0
  %1330 = vmatprep.subr.mxu0 0.0
  %1331 = vmatpush1.msra.mxu0 0.0
  %1332 = vmatprep.subr.mxu0 0.0
  %1333 = vmatpush1.msra.mxu0 0.0
  %1334 = vmatprep.subr.mxu0 0.0
  %1335 = vmatpush1.msra.mxu0 0.0
  %1336 = vmatprep.subr.mxu0 0.0
  %1337 = vmatpush1.msra.mxu0 0.0
  %1338 = vmatprep.subr.mxu0 0.0
  %1339 = vmatpush1.msra.mxu0 0.0
  %1340 = vmatprep.subr.mxu0 0.0
  %1341 = vmatpush1.msra.mxu0 0.0
  %1342 = vmatprep.subr.mxu0 0.0
  %1343 = vmatpush1.msra.mxu0 0.0
  %1344 = vmatprep.subr.mxu0 0.0
  %1345 = vmatpush1.msra.mxu0 0.0
  %1346 = vmatprep.subr.mxu0 0.0
  %1347 = vmatpush1.msra.mxu0 0.0
  %1348 = vmatprep.subr.mxu0 0.0
  %1349 = vmatpush1.msra.mxu0 0.0
  %1350 = vmatprep.subr.mxu0 0.0
  %1351 = vmatpush1.msra.mxu0 0.0
  %1352 = vmatprep.subr.mxu0 0.0
  %1353 = vmatpush1.msra.mxu0 0.0
  %1354 = vmatprep.subr.mxu0 0.0
  %1355 = vmatpush1.msra.mxu0 0.0
  %1356 = vmatprep.subr.mxu0 0.0
  %1357 = vmatpush1.msra.mxu0 0.0
  %1358 = vmatprep.subr.mxu0 0.0
  %1359 = vmatpush1.msra.mxu0 0.0
  %1360 = vmatprep.subr.mxu0 0.0
  %1361 = vmatpush1.msra.mxu0 0.0
  %1362 = vmatprep.mubr.f32.mxu0 0.0
  %1363 = vmatmul.mubr.f32.gmra.mrb[0].mxu0 %v1296
  %v1364 = vpop.f32.mrb[0].mxu0
  %v1365 = vadd.f32 %v1292, %v1364
  %v1366 = vpop.f32.mrb[0].mxu0
  %1367 = vdwg.mxu0
  %v1368 = vadd.f32 %v1365, %v187
  %v1369 = vmax.f32 %v1368, 0.0
  %1370 = vmatprep.subr.mxu0 0.0
  %1371 = vmatpush1.msra.mxu0 %v30
  %1372 = vmatprep.subr.mxu0 0.0
  %1373 = vmatpush1.msra.mxu0 %v31
  %1374 = vmatprep.subr.mxu0 0.0
  %1375 = vmatpush1.msra.mxu0 %v32
  %1376 = vmatprep.subr.mxu0 0.0
  %1377 = vmatpush1.msra.mxu0 %v33
  %1378 = vmatprep.subr.mxu0 0.0
  %1379 = vmatpush1.msra.mxu0 0.0
  %1380 = vmatprep.subr.mxu0 0.0
  %1381 = vmatpush1.msra.mxu0 0.0
  %1382 = vmatprep.subr.mxu0 0.0
  %1383 = vmatpush1.msra.mxu0 0.0
  %1384 = vmatprep.subr.mxu0 0.0
  %1385 = vmatpush1.msra.mxu0 0.0
  %1386 = vmatprep.subr.mxu0 0.0
  %1387 = vmatpush1.msra.mxu0 0.0
  %1388 = vmatprep.subr.mxu0 0.0
  %1389 = vmatpush1.msra.mxu0 0.0
  %1390 = vmatprep.subr.mxu0 0.0
  %1391 = vmatpush1.msra.mxu0 0.0
  %1392 = vmatprep.subr.mxu0 0.0
  %1393 = vmatpush1.msra.mxu0 0.0
  %1394 = vmatprep.subr.mxu0 0.0
  %1395 = vmatpush1.msra.mxu0 0.0
  %1396 = vmatprep.subr.mxu0 0.0
  %1397 = vmatpush1.msra.mxu0 0.0
  %1398 = vmatprep.subr.mxu0 0.0
  %1399 = vmatpush1.msra.mxu0 0.0
  %1400 = vmatprep.subr.mxu0 0.0
  %1401 = vmatpush1.msra.mxu0 0.0
  %1402 = vmatprep.subr.mxu0 0.0
  %1403 = vmatpush1.msra.mxu0 0.0
  %1404 = vmatprep.subr.mxu0 0.0
  %1405 = vmatpush1.msra.mxu0 0.0
  %1406 = vmatprep.subr.mxu0 0.0
  %1407 = vmatpush1.msra.mxu0 0.0
  %1408 = vmatprep.subr.mxu0 0.0
  %1409 = vmatpush1.msra.mxu0 0.0
  %1410 = vmatprep.subr.mxu0 0.0
  %1411 = vmatpush1.msra.mxu0 0.0
  %1412 = vmatprep.subr.mxu0 0.0
  %1413 = vmatpush1.msra.mxu0 0.0
  %1414 = vmatprep.subr.mxu0 0.0
  %1415 = vmatpush1.msra.mxu0 0.0
  %1416 = vmatprep.subr.mxu0 0.0
  %1417 = vmatpush1.msra.mxu0 0.0
  %1418 = vmatprep.subr.mxu0 0.0
  %1419 = vmatpush1.msra.mxu0 0.0
  %1420 = vmatprep.subr.mxu0 0.0
  %1421 = vmatpush1.msra.mxu0 0.0
  %1422 = vmatprep.subr.mxu0 0.0
  %1423 = vmatpush1.msra.mxu0 0.0
  %1424 = vmatprep.subr.mxu0 0.0
  %1425 = vmatpush1.msra.mxu0 0.0
  %1426 = vmatprep.subr.mxu0 0.0
  %1427 = vmatpush1.msra.mxu0 0.0
  %1428 = vmatprep.subr.mxu0 0.0
  %1429 = vmatpush1.msra.mxu0 0.0
  %1430 = vmatprep.subr.mxu0 0.0
  %1431 = vmatpush1.msra.mxu0 0.0
  %1432 = vmatprep.subr.mxu0 0.0
  %1433 = vmatpush1.msra.mxu0 0.0
  %1434 = vmatprep.mubr.f32.mxu0 0.0
  %1435 = vmatmul.mubr.f32.gmra.mrb[0].mxu0 %v1296
  %v1436 = vpop.f32.mrb[0].mxu0
  %v1437 = vadd.f32 0.0, %v1436
  %v1438 = vpop.f32.mrb[0].mxu0
  %1439 = vdwg.mxu0
  %v1440 = vadd.f32 %v163, %v1437
  %v1441 = vmax.f32 %v1440, 0.0
  %v1443 = vsel %vm195, %v1369, 0
  %1445 = vmatprep.subr.mxu0 0.0
  %1446 = vmatpush1.msra.mxu0 %v177
  %1447 = vmatprep.subr.mxu0 0.0
  %1448 = vmatpush1.msra.mxu0 %v178
  %1449 = vmatprep.subr.mxu0 0.0
  %1450 = vmatpush1.msra.mxu0 %v179
  %1451 = vmatprep.subr.mxu0 0.0
  %1452 = vmatpush1.msra.mxu0 %v180
  %1453 = vmatprep.subr.mxu0 0.0
  %1454 = vmatpush1.msra.mxu0 0.0
  %1455 = vmatprep.subr.mxu0 0.0
  %1456 = vmatpush1.msra.mxu0 0.0
  %1457 = vmatprep.subr.mxu0 0.0
  %1458 = vmatpush1.msra.mxu0 0.0
  %1459 = vmatprep.subr.mxu0 0.0
  %1460 = vmatpush1.msra.mxu0 0.0
  %1461 = vmatprep.subr.mxu0 0.0
  %1462 = vmatpush1.msra.mxu0 0.0
  %1463 = vmatprep.subr.mxu0 0.0
  %1464 = vmatpush1.msra.mxu0 0.0
  %1465 = vmatprep.subr.mxu0 0.0
  %1466 = vmatpush1.msra.mxu0 0.0
  %1467 = vmatprep.subr.mxu0 0.0
  %1468 = vmatpush1.msra.mxu0 0.0
  %1469 = vmatprep.subr.mxu0 0.0
  %1470 = vmatpush1.msra.mxu0 0.0
  %1471 = vmatprep.subr.mxu0 0.0
  %1472 = vmatpush1.msra.mxu0 0.0
  %1473 = vmatprep.subr.mxu0 0.0
  %1474 = vmatpush1.msra.mxu0 0.0
  %1475 = vmatprep.subr.mxu0 0.0
  %1476 = vmatpush1.msra.mxu0 0.0
  %1477 = vmatprep.subr.mxu0 0.0
  %1478 = vmatpush1.msra.mxu0 0.0
  %1479 = vmatprep.subr.mxu0 0.0
  %1480 = vmatpush1.msra.mxu0 0.0
  %1481 = vmatprep.subr.mxu0 0.0
  %1482 = vmatpush1.msra.mxu0 0.0
  %1483 = vmatprep.subr.mxu0 0.0
  %1484 = vmatpush1.msra.mxu0 0.0
  %1485 = vmatprep.subr.mxu0 0.0
  %1486 = vmatpush1.msra.mxu0 0.0
  %1487 = vmatprep.subr.mxu0 0.0
  %1488 = vmatpush1.msra.mxu0 0.0
  %1489 = vmatprep.subr.mxu0 0.0
  %1490 = vmatpush1.msra.mxu0 0.0
  %1491 = vmatprep.subr.mxu0 0.0
  %1492 = vmatpush1.msra.mxu0 0.0
  %1493 = vmatprep.subr.mxu0 0.0
  %1494 = vmatpush1.msra.mxu0 0.0
  %1495 = vmatprep.subr.mxu0 0.0
  %1496 = vmatpush1.msra.mxu0 0.0
  %1497 = vmatprep.subr.mxu0 0.0
  %1498 = vmatpush1.msra.mxu0 0.0
  %1499 = vmatprep.subr.mxu0 0.0
  %1500 = vmatpush1.msra.mxu0 0.0
  %1501 = vmatprep.subr.mxu0 0.0
  %1502 = vmatpush1.msra.mxu0 0.0
  %1503 = vmatprep.subr.mxu0 0.0
  %1504 = vmatpush1.msra.mxu0 0.0
  %1505 = vmatprep.subr.mxu0 0.0
  %1506 = vmatpush1.msra.mxu0 0.0
  %1507 = vmatprep.subr.mxu0 0.0
  %1508 = vmatpush1.msra.mxu0 0.0
  %1509 = vmatprep.mubr.f32.mxu0 0.0
  %1510 = vmatmul.mubr.f32.gmra.mrb[0].mxu0 %v1443
  %v1511 = vpop.f32.mrb[0].mxu0
  %v1512 = vadd.f32 0.0, %v1511
  %v1513 = vpop.f32.mrb[0].mxu0
  %1514 = vdwg.mxu0
  %v1516 = vsel %vm195, %v1441, 0
  %1518 = vmatprep.subr.mxu0 0.0
  %1519 = vmatpush1.msra.mxu0 %v172
  %1520 = vmatprep.subr.mxu0 0.0
  %1521 = vmatpush1.msra.mxu0 %v173
  %1522 = vmatprep.subr.mxu0 0.0
  %1523 = vmatpush1.msra.mxu0 %v174
  %1524 = vmatprep.subr.mxu0 0.0
  %1525 = vmatpush1.msra.mxu0 %v175
  %1526 = vmatprep.subr.mxu0 0.0
  %1527 = vmatpush1.msra.mxu0 0.0
  %1528 = vmatprep.subr.mxu0 0.0
  %1529 = vmatpush1.msra.mxu0 0.0
  %1530 = vmatprep.subr.mxu0 0.0
  %1531 = vmatpush1.msra.mxu0 0.0
  %1532 = vmatprep.subr.mxu0 0.0
  %1533 = vmatpush1.msra.mxu0 0.0
  %1534 = vmatprep.subr.mxu0 0.0
  %1535 = vmatpush1.msra.mxu0 0.0
  %1536 = vmatprep.subr.mxu0 0.0
  %1537 = vmatpush1.msra.mxu0 0.0
  %1538 = vmatprep.subr.mxu0 0.0
  %1539 = vmatpush1.msra.mxu0 0.0
  %1540 = vmatprep.subr.mxu0 0.0
  %1541 = vmatpush1.msra.mxu0 0.0
  %1542 = vmatprep.subr.mxu0 0.0
  %1543 = vmatpush1.msra.mxu0 0.0
  %1544 = vmatprep.subr.mxu0 0.0
  %1545 = vmatpush1.msra.mxu0 0.0
  %1546 = vmatprep.subr.mxu0 0.0
  %1547 = vmatpush1.msra.mxu0 0.0
  %1548 = vmatprep.subr.mxu0 0.0
  %1549 = vmatpush1.msra.mxu0 0.0
  %1550 = vmatprep.subr.mxu0 0.0
  %1551 = vmatpush1.msra.mxu0 0.0
  %1552 = vmatprep.subr.mxu0 0.0
  %1553 = vmatpush1.msra.mxu0 0.0
  %1554 = vmatprep.subr.mxu0 0.0
  %1555 = vmatpush1.msra.mxu0 0.0
  %1556 = vmatprep.subr.mxu0 0.0
  %1557 = vmatpush1.msra.mxu0 0.0
  %1558 = vmatprep.subr.mxu0 0.0
  %1559 = vmatpush1.msra.mxu0 0.0
  %1560 = vmatprep.subr.mxu0 0.0
  %1561 = vmatpush1.msra.mxu0 0.0
  %1562 = vmatprep.subr.mxu0 0.0
  %1563 = vmatpush1.msra.mxu0 0.0
  %1564 = vmatprep.subr.mxu0 0.0
  %1565 = vmatpush1.msra.mxu0 0.0
  %1566 = vmatprep.subr.mxu0 0.0
  %1567 = vmatpush1.msra.mxu0 0.0
  %1568 = vmatprep.subr.mxu0 0.0
  %1569 = vmatpush1.msra.mxu0 0.0
  %1570 = vmatprep.subr.mxu0 0.0
  %1571 = vmatpush1.msra.mxu0 0.0
  %1572 = vmatprep.subr.mxu0 0.0
  %1573 = vmatpush1.msra.mxu0 0.0
  %1574 = vmatprep.subr.mxu0 0.0
  %1575 = vmatpush1.msra.mxu0 0.0
  %1576 = vmatprep.subr.mxu0 0.0
  %1577 = vmatpush1.msra.mxu0 0.0
  %1578 = vmatprep.subr.mxu0 0.0
  %1579 = vmatpush1.msra.mxu0 0.0
  %1580 = vmatprep.subr.mxu0 0.0
  %1581 = vmatpush1.msra.mxu0 0.0
  %1582 = vmatprep.mubr.f32.mxu0 0.0
  %1583 = vmatmul.mubr.f32.gmra.mrb[0].mxu0 %v1516
  %v1584 = vpop.f32.mrb[0].mxu0
  %v1585 = vadd.f32 %v1512, %v1584
  %v1586 = vpop.f32.mrb[0].mxu0
  %1587 = vdwg.mxu0
  %v1588 = vadd.f32 %v1585, %v187
  %v1589 = vmax.f32 %v1588, 0.0
  %1590 = vmatprep.subr.mxu0 0.0
  %1591 = vmatpush1.msra.mxu0 %v30
  %1592 = vmatprep.subr.mxu0 0.0
  %1593 = vmatpush1.msra.mxu0 %v31
  %1594 = vmatprep.subr.mxu0 0.0
  %1595 = vmatpush1.msra.mxu0 %v32
  %1596 = vmatprep.subr.mxu0 0.0
  %1597 = vmatpush1.msra.mxu0 %v33
  %1598 = vmatprep.subr.mxu0 0.0
  %1599 = vmatpush1.msra.mxu0 0.0
  %1600 = vmatprep.subr.mxu0 0.0
  %1601 = vmatpush1.msra.mxu0 0.0
  %1602 = vmatprep.subr.mxu0 0.0
  %1603 = vmatpush1.msra.mxu0 0.0
  %1604 = vmatprep.subr.mxu0 0.0
  %1605 = vmatpush1.msra.mxu0 0.0
  %1606 = vmatprep.subr.mxu0 0.0
  %1607 = vmatpush1.msra.mxu0 0.0
  %1608 = vmatprep.subr.mxu0 0.0
  %1609 = vmatpush1.msra.mxu0 0.0
  %1610 = vmatprep.subr.mxu0 0.0
  %1611 = vmatpush1.msra.mxu0 0.0
  %1612 = vmatprep.subr.mxu0 0.0
  %1613 = vmatpush1.msra.mxu0 0.0
  %1614 = vmatprep.subr.mxu0 0.0
  %1615 = vmatpush1.msra.mxu0 0.0
  %1616 = vmatprep.subr.mxu0 0.0
  %1617 = vmatpush1.msra.mxu0 0.0
  %1618 = vmatprep.subr.mxu0 0.0
  %1619 = vmatpush1.msra.mxu0 0.0
  %1620 = vmatprep.subr.mxu0 0.0
  %1621 = vmatpush1.msra.mxu0 0.0
  %1622 = vmatprep.subr.mxu0 0.0
  %1623 = vmatpush1.msra.mxu0 0.0
  %1624 = vmatprep.subr.mxu0 0.0
  %1625 = vmatpush1.msra.mxu0 0.0
  %1626 = vmatprep.subr.mxu0 0.0
  %1627 = vmatpush1.msra.mxu0 0.0
  %1628 = vmatprep.subr.mxu0 0.0
  %1629 = vmatpush1.msra.mxu0 0.0
  %1630 = vmatprep.subr.mxu0 0.0
  %1631 = vmatpush1.msra.mxu0 0.0
  %1632 = vmatprep.subr.mxu0 0.0
  %1633 = vmatpush1.msra.mxu0 0.0
  %1634 = vmatprep.subr.mxu0 0.0
  %1635 = vmatpush1.msra.mxu0 0.0
  %1636 = vmatprep.subr.mxu0 0.0
  %1637 = vmatpush1.msra.mxu0 0.0
  %1638 = vmatprep.subr.mxu0 0.0
  %1639 = vmatpush1.msra.mxu0 0.0
  %1640 = vmatprep.subr.mxu0 0.0
  %1641 = vmatpush1.msra.mxu0 0.0
  %1642 = vmatprep.subr.mxu0 0.0
  %1643 = vmatpush1.msra.mxu0 0.0
  %1644 = vmatprep.subr.mxu0 0.0
  %1645 = vmatpush1.msra.mxu0 0.0
  %1646 = vmatprep.subr.mxu0 0.0
  %1647 = vmatpush1.msra.mxu0 0.0
  %1648 = vmatprep.subr.mxu0 0.0
  %1649 = vmatpush1.msra.mxu0 0.0
  %1650 = vmatprep.subr.mxu0 0.0
  %1651 = vmatpush1.msra.mxu0 0.0
  %1652 = vmatprep.subr.mxu0 0.0
  %1653 = vmatpush1.msra.mxu0 0.0
  %1654 = vmatprep.mubr.f32.mxu0 0.0
  %1655 = vmatmul.mubr.f32.gmra.mrb[0].mxu0 %v1516
  %v1656 = vpop.f32.mrb[0].mxu0
  %v1657 = vadd.f32 0.0, %v1656
  %v1658 = vpop.f32.mrb[0].mxu0
  %1659 = vdwg.mxu0
  %v1660 = vadd.f32 %v168, %v1657
  %v1661 = vmax.f32 %v1660, 0.0
  %v1663 = vsel %vm195, %v1589, 0
  %1665 = vmatprep.subr.mxu0 0.0
  %1666 = vmatpush1.msra.mxu0 %v177
  %1667 = vmatprep.subr.mxu0 0.0
  %1668 = vmatpush1.msra.mxu0 %v178
  %1669 = vmatprep.subr.mxu0 0.0
  %1670 = vmatpush1.msra.mxu0 %v179
  %1671 = vmatprep.subr.mxu0 0.0
  %1672 = vmatpush1.msra.mxu0 %v180
  %1673 = vmatprep.subr.mxu0 0.0
  %1674 = vmatpush1.msra.mxu0 0.0
  %1675 = vmatprep.subr.mxu0 0.0
  %1676 = vmatpush1.msra.mxu0 0.0
  %1677 = vmatprep.subr.mxu0 0.0
  %1678 = vmatpush1.msra.mxu0 0.0
  %1679 = vmatprep.subr.mxu0 0.0
  %1680 = vmatpush1.msra.mxu0 0.0
  %1681 = vmatprep.subr.mxu0 0.0
  %1682 = vmatpush1.msra.mxu0 0.0
  %1683 = vmatprep.subr.mxu0 0.0
  %1684 = vmatpush1.msra.mxu0 0.0
  %1685 = vmatprep.subr.mxu0 0.0
  %1686 = vmatpush1.msra.mxu0 0.0
  %1687 = vmatprep.subr.mxu0 0.0
  %1688 = vmatpush1.msra.mxu0 0.0
  %1689 = vmatprep.subr.mxu0 0.0
  %1690 = vmatpush1.msra.mxu0 0.0
  %1691 = vmatprep.subr.mxu0 0.0
  %1692 = vmatpush1.msra.mxu0 0.0
  %1693 = vmatprep.subr.mxu0 0.0
  %1694 = vmatpush1.msra.mxu0 0.0
  %1695 = vmatprep.subr.mxu0 0.0
  %1696 = vmatpush1.msra.mxu0 0.0
  %1697 = vmatprep.subr.mxu0 0.0
  %1698 = vmatpush1.msra.mxu0 0.0
  %1699 = vmatprep.subr.mxu0 0.0
  %1700 = vmatpush1.msra.mxu0 0.0
  %1701 = vmatprep.subr.mxu0 0.0
  %1702 = vmatpush1.msra.mxu0 0.0
  %1703 = vmatprep.subr.mxu0 0.0
  %1704 = vmatpush1.msra.mxu0 0.0
  %1705 = vmatprep.subr.mxu0 0.0
  %1706 = vmatpush1.msra.mxu0 0.0
  %1707 = vmatprep.subr.mxu0 0.0
  %1708 = vmatpush1.msra.mxu0 0.0
  %1709 = vmatprep.subr.mxu0 0.0
  %1710 = vmatpush1.msra.mxu0 0.0
  %1711 = vmatprep.subr.mxu0 0.0
  %1712 = vmatpush1.msra.mxu0 0.0
  %1713 = vmatprep.subr.mxu0 0.0
  %1714 = vmatpush1.msra.mxu0 0.0
  %1715 = vmatprep.subr.mxu0 0.0
  %1716 = vmatpush1.msra.mxu0 0.0
  %1717 = vmatprep.subr.mxu0 0.0
  %1718 = vmatpush1.msra.mxu0 0.0
  %1719 = vmatprep.subr.mxu0 0.0
  %1720 = vmatpush1.msra.mxu0 0.0
  %1721 = vmatprep.subr.mxu0 0.0
  %1722 = vmatpush1.msra.mxu0 0.0
  %1723 = vmatprep.subr.mxu0 0.0
  %1724 = vmatpush1.msra.mxu0 0.0
  %1725 = vmatprep.subr.mxu0 0.0
  %1726 = vmatpush1.msra.mxu0 0.0
  %1727 = vmatprep.subr.mxu0 0.0
  %1728 = vmatpush1.msra.mxu0 0.0
  %1729 = vmatprep.mubr.f32.mxu0 0.0
  %1730 = vmatmul.mubr.f32.gmra.mrb[0].mxu0 %v1663
  %v1731 = vpop.f32.mrb[0].mxu0
  %v1732 = vadd.f32 0.0, %v1731
  %v1733 = vpop.f32.mrb[0].mxu0
  %1734 = vdwg.mxu0
  %v1736 = vsel %vm195, %v1661, 0
  %1738 = vmatprep.subr.mxu0 0.0
  %1739 = vmatpush1.msra.mxu0 %v172
  %1740 = vmatprep.subr.mxu0 0.0
  %1741 = vmatpush1.msra.mxu0 %v173
  %1742 = vmatprep.subr.mxu0 0.0
  %1743 = vmatpush1.msra.mxu0 %v174
  %1744 = vmatprep.subr.mxu0 0.0
  %1745 = vmatpush1.msra.mxu0 %v175
  %1746 = vmatprep.subr.mxu0 0.0
  %1747 = vmatpush1.msra.mxu0 0.0
  %1748 = vmatprep.subr.mxu0 0.0
  %1749 = vmatpush1.msra.mxu0 0.0
  %1750 = vmatprep.subr.mxu0 0.0
  %1751 = vmatpush1.msra.mxu0 0.0
  %1752 = vmatprep.subr.mxu0 0.0
  %1753 = vmatpush1.msra.mxu0 0.0
  %1754 = vmatprep.subr.mxu0 0.0
  %1755 = vmatpush1.msra.mxu0 0.0
  %1756 = vmatprep.subr.mxu0 0.0
  %1757 = vmatpush1.msra.mxu0 0.0
  %1758 = vmatprep.subr.mxu0 0.0
  %1759 = vmatpush1.msra.mxu0 0.0
  %1760 = vmatprep.subr.mxu0 0.0
  %1761 = vmatpush1.msra.mxu0 0.0
  %1762 = vmatprep.subr.mxu0 0.0
  %1763 = vmatpush1.msra.mxu0 0.0
  %1764 = vmatprep.subr.mxu0 0.0
  %1765 = vmatpush1.msra.mxu0 0.0
  %1766 = vmatprep.subr.mxu0 0.0
  %1767 = vmatpush1.msra.mxu0 0.0
  %1768 = vmatprep.subr.mxu0 0.0
  %1769 = vmatpush1.msra.mxu0 0.0
  %1770 = vmatprep.subr.mxu0 0.0
  %1771 = vmatpush1.msra.mxu0 0.0
  %1772 = vmatprep.subr.mxu0 0.0
  %1773 = vmatpush1.msra.mxu0 0.0
  %1774 = vmatprep.subr.mxu0 0.0
  %1775 = vmatpush1.msra.mxu0 0.0
  %1776 = vmatprep.subr.mxu0 0.0
  %1777 = vmatpush1.msra.mxu0 0.0
  %1778 = vmatprep.subr.mxu0 0.0
  %1779 = vmatpush1.msra.mxu0 0.0
  %1780 = vmatprep.subr.mxu0 0.0
  %1781 = vmatpush1.msra.mxu0 0.0
  %1782 = vmatprep.subr.mxu0 0.0
  %1783 = vmatpush1.msra.mxu0 0.0
  %1784 = vmatprep.subr.mxu0 0.0
  %1785 = vmatpush1.msra.mxu0 0.0
  %1786 = vmatprep.subr.mxu0 0.0
  %1787 = vmatpush1.msra.mxu0 0.0
  %1788 = vmatprep.subr.mxu0 0.0
  %1789 = vmatpush1.msra.mxu0 0.0
  %1790 = vmatprep.subr.mxu0 0.0
  %1791 = vmatpush1.msra.mxu0 0.0
  %1792 = vmatprep.subr.mxu0 0.0
  %1793 = vmatpush1.msra.mxu0 0.0
  %1794 = vmatprep.subr.mxu0 0.0
  %1795 = vmatpush1.msra.mxu0 0.0
  %1796 = vmatprep.subr.mxu0 0.0
  %1797 = vmatpush1.msra.mxu0 0.0
  %1798 = vmatprep.subr.mxu0 0.0
  %1799 = vmatpush1.msra.mxu0 0.0
  %1800 = vmatprep.subr.mxu0 0.0
  %1801 = vmatpush1.msra.mxu0 0.0
  %1802 = vmatprep.mubr.f32.mxu0 0.0
  %1803 = vmatmul.mubr.f32.gmra.mrb[0].mxu0 %v1736
  %v1804 = vpop.f32.mrb[0].mxu0
  %v1805 = vadd.f32 %v1732, %v1804
  %v1806 = vpop.f32.mrb[0].mxu0
  %1807 = vdwg.mxu0
  %v1808 = vadd.f32 %v1805, %v187
  %v1809 = vmax.f32 %v1808, 0.0
  %v1810 = vlaneseq
  %v1811 = vshrl.u32 %v1810, 7
  %v1812 = vsub.s32 0, %v1811
  %v1813 = vrot.slane %v193, %v1812
  %v1815 = vsel %vm195, %v1809, 0
  %1817 = vmatprep.subr.mxu0 0.0
  %1818 = vmatpush1.msra.mxu0 %v189
  %1819 = vmatprep.subr.mxu0 0.0
  %1820 = vmatpush1.msra.mxu0 %v190
  %1821 = vmatprep.subr.mxu0 0.0
  %1822 = vmatpush1.msra.mxu0 %v191
  %1823 = vmatprep.subr.mxu0 0.0
  %1824 = vmatpush1.msra.mxu0 %v192
  %1825 = vmatprep.subr.mxu0 0.0
  %1826 = vmatpush1.msra.mxu0 0.0
  %1827 = vmatprep.subr.mxu0 0.0
  %1828 = vmatpush1.msra.mxu0 0.0
  %1829 = vmatprep.subr.mxu0 0.0
  %1830 = vmatpush1.msra.mxu0 0.0
  %1831 = vmatprep.subr.mxu0 0.0
  %1832 = vmatpush1.msra.mxu0 0.0
  %1833 = vmatprep.subr.mxu0 0.0
  %1834 = vmatpush1.msra.mxu0 0.0
  %1835 = vmatprep.subr.mxu0 0.0
  %1836 = vmatpush1.msra.mxu0 0.0
  %1837 = vmatprep.subr.mxu0 0.0
  %1838 = vmatpush1.msra.mxu0 0.0
  %1839 = vmatprep.subr.mxu0 0.0
  %1840 = vmatpush1.msra.mxu0 0.0
  %1841 = vmatprep.subr.mxu0 0.0
  %1842 = vmatpush1.msra.mxu0 0.0
  %1843 = vmatprep.subr.mxu0 0.0
  %1844 = vmatpush1.msra.mxu0 0.0
  %1845 = vmatprep.subr.mxu0 0.0
  %1846 = vmatpush1.msra.mxu0 0.0
  %1847 = vmatprep.subr.mxu0 0.0
  %1848 = vmatpush1.msra.mxu0 0.0
  %1849 = vmatprep.subr.mxu0 0.0
  %1850 = vmatpush1.msra.mxu0 0.0
  %1851 = vmatprep.subr.mxu0 0.0
  %1852 = vmatpush1.msra.mxu0 0.0
  %1853 = vmatprep.subr.mxu0 0.0
  %1854 = vmatpush1.msra.mxu0 0.0
  %1855 = vmatprep.subr.mxu0 0.0
  %1856 = vmatpush1.msra.mxu0 0.0
  %1857 = vmatprep.subr.mxu0 0.0
  %1858 = vmatpush1.msra.mxu0 0.0
  %1859 = vmatprep.subr.mxu0 0.0
  %1860 = vmatpush1.msra.mxu0 0.0
  %1861 = vmatprep.subr.mxu0 0.0
  %1862 = vmatpush1.msra.mxu0 0.0
  %1863 = vmatprep.subr.mxu0 0.0
  %1864 = vmatpush1.msra.mxu0 0.0
  %1865 = vmatprep.subr.mxu0 0.0
  %1866 = vmatpush1.msra.mxu0 0.0
  %1867 = vmatprep.subr.mxu0 0.0
  %1868 = vmatpush1.msra.mxu0 0.0
  %1869 = vmatprep.subr.mxu0 0.0
  %1870 = vmatpush1.msra.mxu0 0.0
  %1871 = vmatprep.subr.mxu0 0.0
  %1872 = vmatpush1.msra.mxu0 0.0
  %1873 = vmatprep.subr.mxu0 0.0
  %1874 = vmatpush1.msra.mxu0 0.0
  %1875 = vmatprep.subr.mxu0 0.0
  %1876 = vmatpush1.msra.mxu0 0.0
  %1877 = vmatprep.subr.mxu0 0.0
  %1878 = vmatpush1.msra.mxu0 0.0
  %1879 = vmatprep.subr.mxu0 0.0
  %1880 = vmatpush1.msra.mxu0 0.0
  %1881 = vmatprep.mubr.f32.mxu0 0.0
  %1882 = vmatmul.mubr.f32.gmra.mrb[0].mxu0 %v1815
  %v1883 = vpop.f32.mrb[0].mxu0
  %v1884 = vadd.f32 %v1813, %v1883
  %v1885 = vpop.f32.mrb[0].mxu0
  %1886 = vdwg.mxu0
  %v1887 = vxor.u32 %v1884, 2147483648
  %v1888 = vmul.f32 %v1887, 1.442695
  %v1889 = vpow.pop %v1888
  %v1890 = vadd.f32 %v1889, 1.0
  %v1891 = vrcp.pop %v1890
  %v1892 = vmul.f32 1.0, %v1891
  %1893 = vst [vmem:[%s5] sm:$0xff] %v1892
  // Predicated region
  $region22: #{rnn_model_forward.1} parent=0 // pred_check
    _
  $region23: #{rnn_model_forward.1} parent=0 // pred_check_branch
    %1895 = sbr.rel (0) target = $region25
  $region24: #{rnn_model_forward.1} parent=0 // pred_region
    _
  $region25: #{rnn_model_forward.1} parent=0 // pred_fallthru
    _
  // Predicated region
  $region26: #{rnn_model_forward.1} parent=0 // pred_check
    _
  $region27: #{rnn_model_forward.1} parent=0 // pred_check_branch
    %1897 = sbr.rel (0) target = $region29
  $region28: #{rnn_model_forward.1} parent=0 // pred_region
    _
  $region29: #{rnn_model_forward.1} parent=0 // pred_fallthru
    _

</llo_original>
